<compile_context>
chip_gen: v6e
topology: v6e:2x2x1
jax: 0.10.0
libtpu: 0.0.40
codegen_flags: <defaults>
</compile_context>

<pallas_src>
import functools

import jax
import jax.numpy as jnp
from jax import lax
from jax.experimental import pallas as pl
from jax.experimental.pallas import tpu as pltpu


def _round_up(x, m):
    return ((x + m - 1) // m) * m


# --------------------------------------------------------------------------- #
# Kernel 1: per-node projections (O(N))
# --------------------------------------------------------------------------- #
def _proj_kernel(x_ref, wg_ref, ab_ref, wp_ref,
                 adst_ref, asrct_ref, fproj_ref, *, num_heads, head_dim):
    # x tile [T, Cin] bf16 @ W_gat [Cin, H*D] bf16 -> feat [T, H*D] (f32 acc)
    feat = jnp.dot(x_ref[...], wg_ref[...], preferred_element_type=jnp.float32)
    featb = feat.astype(jnp.bfloat16)

    # Fused attention logits: [T, H*D] @ [H*D, 2H]; cols 0:H = dst, H:2H = src.
    alpha = jnp.dot(featb, ab_ref[...], preferred_element_type=jnp.float32)
    adst_ref[...] = alpha[:, :num_heads]           # [T, H]
    asrct_ref[...] = alpha[:, num_heads:].T        # [H, T] (one small transpose / tile)

    # Per-head pre-projection feat_h @ Wproj_h -> [T, Cout], stored head-major so the
    # attention kernel reads each head with a free leading-axis index.
    for h in range(num_heads):
        fh = featb[:, h * head_dim:(h + 1) * head_dim]            # [T, D]
        wh = wp_ref[h * head_dim:(h + 1) * head_dim, :]           # [D, Cout]
        fproj_ref[h] = jnp.dot(
            fh, wh, preferred_element_type=jnp.float32).astype(jnp.bfloat16)


# --------------------------------------------------------------------------- #
# Kernel 2: masked softmax attention + aggregation + LayerNorm (O(N^2))
# --------------------------------------------------------------------------- #
def _attn_kernel(adj_ref, adst_ref, asrct_ref, fproj_ref,
                 bias_ref, gamma_ref, beta_ref, o_ref,
                 *, num_heads, out_channels, out_pad, neg_slope, ln_eps):
    tile_i = o_ref.shape[0]
    adj = adj_ref[...].astype(jnp.float32)         # int8 HBM stream -> f32 in VMEM
    mask = adj > 0.0                               # [T, Np], computed once
    a_dst = adst_ref[...]                          # [T, H]  f32
    a_src_t = asrct_ref[...]                       # [H, Np] f32

    acc = jnp.zeros((tile_i, out_channels), jnp.float32)
    for h in range(num_heads):
        # e[i, j] = leaky_relu(alpha_dst[i, h] + alpha_src[j, h])  for edge j -> i
        e = a_dst[:, h:h + 1] + a_src_t[h:h + 1, :]                # [T, Np]
        e = jnp.where(e > 0, e, neg_slope * e)                     # LeakyReLU(0.2)
        e = jnp.where(mask, e, jnp.float32(-1e9))                  # mask non-edges
        e = e - jnp.max(e, axis=-1, keepdims=True)
        p = jnp.exp(e)
        p = p * pl.reciprocal(jnp.sum(p, axis=-1, keepdims=True), approx=True)
        # Aggregate directly in the projected basis: [T, Np] @ [Np, Cout]
        acc = acc + jnp.dot(p.astype(jnp.bfloat16), fproj_ref[h],
                            preferred_element_type=jnp.float32)

    acc = acc + bias_ref[...]                      # fused (b_gat @ Wproj + b_proj)

    # LayerNorm over the real out_channels
    mu = jnp.mean(acc, axis=-1, keepdims=True)
    diff = acc - mu
    var = jnp.mean(diff * diff, axis=-1, keepdims=True)
    y = diff * lax.rsqrt(var + ln_eps) * gamma_ref[...] + beta_ref[...]
    # TODO(synk): training-mode dropout not implemented (eval-mode identity).

    if out_pad > out_channels:                     # lane-dense (128-multiple) store
        y = jnp.concatenate(
            [y, jnp.zeros((tile_i, out_pad - out_channels), jnp.float32)], axis=-1)
    o_ref[...] = y


# --------------------------------------------------------------------------- #
# Wrapper
# --------------------------------------------------------------------------- #
def hetero_gat_layer(x, edge_index, params, *, num_heads, head_dim,
                     neg_slope=0.2, ln_eps=1e-5, tile_i=128):
    """x: [N, Cin] f32, edge_index: [2, E] int32 (row 0 = src, row 1 = dst)."""
    n, in_c = x.shape
    out_c = params["w_proj"].shape[1]
    hd = num_heads * head_dim
    n_pad = max(tile_i, _round_up(n, tile_i))
    out_pad = _round_up(max(out_c, 128), 128)

    # --- glue: pad nodes, densify graph into an int8 adjacency mask (self loops added)
    x_pad = jnp.zeros((n_pad, in_c), jnp.float32).at[:n].set(x).astype(jnp.bfloat16)
    src, dst = edge_index[0], edge_index[1]
    non_self = (src != dst).astype(jnp.int8)
    adj = jnp.zeros((n_pad, n_pad), jnp.int8).at[dst, src].max(non_self)
    idx = jnp.arange(n)
    adj = adj.at[idx, idx].set(jnp.int8(1))        # self loops on real nodes only

    # --- glue: block-diagonal att packs, dst cols first then src -> [H*D, 2H]
    eye = jnp.eye(num_heads, dtype=jnp.float32)
    pack = lambda att: (att[:, :, None] * eye[:, None, :]).reshape(hd, num_heads)
    a_both = jnp.concatenate(
        [pack(params["att_dst"]), pack(params["att_src"])], axis=1).astype(jnp.bfloat16)

    w_gat = params["w_gat"].astype(jnp.bfloat16)
    w_proj = params["w_proj"].astype(jnp.bfloat16)
    bias = (params["b_gat"] @ params["w_proj"] + params["b_proj"]).reshape(1, out_c)
    gamma = params["gamma"].reshape(1, out_c)
    beta = params["beta"].reshape(1, out_c)

    grid = (n_pad // tile_i,)
    cparams = pltpu.CompilerParams(
        dimension_semantics=("parallel",),
        vmem_limit_bytes=32 * 1024 * 1024)

    # ---- kernel 1: per-node projections ----
    adst, asrct, fproj = pl.pallas_call(
        functools.partial(_proj_kernel, num_heads=num_heads, head_dim=head_dim),
        out_shape=(
            jax.ShapeDtypeStruct((n_pad, num_heads), jnp.float32),          # alpha_dst
            jax.ShapeDtypeStruct((num_heads, n_pad), jnp.float32),          # alpha_src^T
            jax.ShapeDtypeStruct((num_heads, n_pad, out_c), jnp.bfloat16),  # feat_h @ Wproj_h
        ),
        grid=grid,
        in_specs=[
            pl.BlockSpec((tile_i, in_c), lambda j: (j, 0)),        # x tile
            pl.BlockSpec((in_c, hd), lambda j: (0, 0)),            # W_gat (resident)
            pl.BlockSpec((hd, 2 * num_heads), lambda j: (0, 0)),   # att packs (resident)
            pl.BlockSpec((hd, out_c), lambda j: (0, 0)),           # W_proj (resident)
        ],
        out_specs=(
            pl.BlockSpec((tile_i, num_heads), lambda j: (j, 0)),
            pl.BlockSpec((num_heads, tile_i), lambda j: (0, j)),
            pl.BlockSpec((num_heads, tile_i, out_c), lambda j: (0, j, 0)),
        ),
        compiler_params=cparams,
    )(x_pad, w_gat, a_both, w_proj)

    # ---- kernel 2: row-tiled attention + LayerNorm ----
    out_padded = pl.pallas_call(
        functools.partial(_attn_kernel, num_heads=num_heads, out_channels=out_c,
                          out_pad=out_pad, neg_slope=neg_slope, ln_eps=ln_eps),
        out_shape=jax.ShapeDtypeStruct((n_pad, out_pad), jnp.float32),
        grid=grid,
        in_specs=[
            pl.BlockSpec((tile_i, n_pad), lambda i: (i, 0)),               # adj row slab
            pl.BlockSpec((tile_i, num_heads), lambda i: (i, 0)),           # alpha_dst rows
            pl.BlockSpec((num_heads, n_pad), lambda i: (0, 0)),            # alpha_src^T (resident)
            pl.BlockSpec((num_heads, n_pad, out_c), lambda i: (0, 0, 0)),  # fproj (resident)
            pl.BlockSpec((1, out_c), lambda i: (0, 0)),                    # fused bias
            pl.BlockSpec((1, out_c), lambda i: (0, 0)),                    # gamma
            pl.BlockSpec((1, out_c), lambda i: (0, 0)),                    # beta
        ],
        out_specs=pl.BlockSpec((tile_i, out_pad), lambda i: (i, 0)),
        compiler_params=cparams,
    )(adj, adst, asrct, fproj, bias, gamma, beta)

    return out_padded[:n, :out_c]


def init_params(key, in_channels, out_channels, num_heads, head_dim):
    hd = num_heads * head_dim
    ks = jax.random.split(key, 5)
    scale = lambda fan_in: 1.0 / jnp.sqrt(jnp.float32(fan_in))
    return {
        "w_gat": jax.random.normal(ks[0], (in_channels, hd), jnp.float32) * scale(in_channels),
        "att_src": jax.random.normal(ks[1], (num_heads, head_dim), jnp.float32) * scale(head_dim),
        "att_dst": jax.random.normal(ks[2], (num_heads, head_dim), jnp.float32) * scale(head_dim),
        "b_gat": jnp.zeros((hd,), jnp.float32),
        "w_proj": jax.random.normal(ks[3], (hd, out_channels), jnp.float32) * scale(hd),
        "b_proj": jnp.zeros((out_channels,), jnp.float32),
        "gamma": jnp.ones((out_channels,), jnp.float32),
        "beta": jnp.zeros((out_channels,), jnp.float32),
    }


if __name__ == "__main__":
    # Small shapes consistent with the module: in_channels=32, out_channels=32,
    # num_heads=8 -> head_dim = max(8, 32 // 8) = 8.
    N, IN_C, OUT_C, HEADS = 16, 32, 32, 8
    HEAD_DIM = max(8, OUT_C // HEADS)
    E = 40

    key = jax.random.PRNGKey(0)
    k_x, k_e, k_p = jax.random.split(key, 3)

    x = jax.random.normal(k_x, (N, IN_C), jnp.float32)
    edge_index = jax.random.randint(k_e, (2, E), 0, N, jnp.int32)
    params = init_params(k_p, IN_C, OUT_C, HEADS, HEAD_DIM)

    out = hetero_gat_layer(x, edge_index, params,
                           num_heads=HEADS, head_dim=HEAD_DIM)
    jax.block_until_ready(out)
    assert out.shape == (N, OUT_C)
    assert bool(jnp.all(jnp.isfinite(out)))
    print("KERNEL_OK")
</pallas_src>

<mosaic_0001>
module attributes {stable_mosaic.version = 11 : i64} {
  func.func @_proj_kernel(%arg0: i32, %arg1: memref<128x32xbf16, #tpu.memory_space<vmem>>, %arg2: memref<32x64xbf16, #tpu.memory_space<vmem>>, %arg3: memref<64x16xbf16, #tpu.memory_space<vmem>>, %arg4: memref<64x32xbf16, #tpu.memory_space<vmem>>, %arg5: memref<128x8xf32, #tpu.memory_space<vmem>>, %arg6: memref<8x128xf32, #tpu.memory_space<vmem>>, %arg7: memref<8x128x32xbf16, #tpu.memory_space<vmem>>) attributes {dimension_semantics = [#tpu.dimension_semantics<parallel>], iteration_bounds = array<i64: 1>, scalar_prefetch = 0 : i64, scratch_operands = 0 : i64, tpu.core_type = #tpu.core_type<tc>, window_params = [{transform_indices = @transform_0, window_bounds = array<i64: 128, 32>}, {pipeline_mode = #tpu.pipeline_mode<synchronous>, transform_indices = @transform_1, window_bounds = array<i64: 32, 64>}, {pipeline_mode = #tpu.pipeline_mode<synchronous>, transform_indices = @transform_2, window_bounds = array<i64: 64, 16>}, {pipeline_mode = #tpu.pipeline_mode<synchronous>, transform_indices = @transform_3, window_bounds = array<i64: 64, 32>}, {transform_indices = @transform_4, window_bounds = array<i64: 128, 8>}, {transform_indices = @transform_5, window_bounds = array<i64: 8, 128>}, {transform_indices = @transform_6, window_bounds = array<i64: 8, 128, 32>}]} {
    %c0 = arith.constant 0 : index
    %c0_0 = arith.constant 0 : index
    %0 = vector.load %arg1[%c0, %c0_0] : memref<128x32xbf16, #tpu.memory_space<vmem>>, vector<128x32xbf16>
    %c0_1 = arith.constant 0 : index
    %c0_2 = arith.constant 0 : index
    %1 = vector.load %arg2[%c0_1, %c0_2] : memref<32x64xbf16, #tpu.memory_space<vmem>>, vector<32x64xbf16>
    %cst = arith.constant dense<0.000000e+00> : vector<128x64xf32>
    %2 = tpu.matmul %0, %1, %cst {dimension_numbers = #tpu.dot_dimension_numbers<[1], [0], [0], [1], [0, 0, 1, 1], [], []>} : vector<128x32xbf16>, vector<32x64xbf16>, vector<128x64xf32> -> vector<128x64xf32>
    %3 = arith.truncf %2 : vector<128x64xf32> to vector<128x64xbf16>
    %c0_3 = arith.constant 0 : index
    %c0_4 = arith.constant 0 : index
    %4 = vector.load %arg3[%c0_3, %c0_4] : memref<64x16xbf16, #tpu.memory_space<vmem>>, vector<64x16xbf16>
    %cst_5 = arith.constant dense<0.000000e+00> : vector<128x16xf32>
    %5 = tpu.matmul %3, %4, %cst_5 {dimension_numbers = #tpu.dot_dimension_numbers<[1], [0], [0], [1], [0, 0, 1, 1], [], []>} : vector<128x64xbf16>, vector<64x16xbf16>, vector<128x16xf32> -> vector<128x16xf32>
    %6 = vector.extract_strided_slice %5 {offsets = [0, 0], sizes = [128, 8], strides = [1, 1]} : vector<128x16xf32> to vector<128x8xf32>
    %c0_6 = arith.constant 0 : index
    %c0_7 = arith.constant 0 : index
    %7 = vector.load %arg5[%c0_6, %c0_7] : memref<128x8xf32, #tpu.memory_space<vmem>>, vector<128x8xf32>
    tpu.vector_store %arg5[%c0_6, %c0_7], %6 {strides = array<i32>} : memref<128x8xf32, #tpu.memory_space<vmem>>, vector<128x8xf32>,
    %8 = vector.extract_strided_slice %5 {offsets = [0, 8], sizes = [128, 8], strides = [1, 1]} : vector<128x16xf32> to vector<128x8xf32>
    %9 = tpu.transpose %8, [1, 0] : vector<128x8xf32> -> vector<8x128xf32>
    %c0_8 = arith.constant 0 : index
    %c0_9 = arith.constant 0 : index
    %10 = vector.load %arg6[%c0_8, %c0_9] : memref<8x128xf32, #tpu.memory_space<vmem>>, vector<8x128xf32>
    tpu.vector_store %arg6[%c0_8, %c0_9], %9 {strides = array<i32>} : memref<8x128xf32, #tpu.memory_space<vmem>>, vector<8x128xf32>,
    %11 = vector.extract_strided_slice %3 {offsets = [0, 0], sizes = [128, 8], strides = [1, 1]} : vector<128x64xbf16> to vector<128x8xbf16>
    %c0_10 = arith.constant 0 : index
    %c0_11 = arith.constant 0 : index
    %12 = vector.load %arg4[%c0_10, %c0_11] : memref<64x32xbf16, #tpu.memory_space<vmem>>, vector<8x32xbf16>
    %cst_12 = arith.constant dense<0.000000e+00> : vector<128x32xf32>
    %13 = tpu.matmul %11, %12, %cst_12 {dimension_numbers = #tpu.dot_dimension_numbers<[1], [0], [0], [1], [0, 0, 1, 1], [], []>} : vector<128x8xbf16>, vector<8x32xbf16>, vector<128x32xf32> -> vector<128x32xf32>
    %14 = arith.truncf %13 : vector<128x32xf32> to vector<128x32xbf16>
    %c0_13 = arith.constant 0 : index
    %c0_14 = arith.constant 0 : index
    %c0_15 = arith.constant 0 : index
    %15 = vector.load %arg7[%c0_13, %c0_14, %c0_15] : memref<8x128x32xbf16, #tpu.memory_space<vmem>>, vector<1x128x32xbf16>
    %16 = vector.shape_cast %15 : vector<1x128x32xbf16> to vector<128x32xbf16>
    %17 = vector.shape_cast %14 : vector<128x32xbf16> to vector<1x128x32xbf16>
    tpu.vector_store %arg7[%c0_13, %c0_14, %c0_15], %17 {strides = array<i32>} : memref<8x128x32xbf16, #tpu.memory_space<vmem>>, vector<1x128x32xbf16>,
    %18 = vector.extract_strided_slice %3 {offsets = [0, 8], sizes = [128, 8], strides = [1, 1]} : vector<128x64xbf16> to vector<128x8xbf16>
    %c8 = arith.constant 8 : index
    %c0_16 = arith.constant 0 : index
    %19 = vector.load %arg4[%c8, %c0_16] : memref<64x32xbf16, #tpu.memory_space<vmem>>, vector<8x32xbf16>
    %cst_17 = arith.constant dense<0.000000e+00> : vector<128x32xf32>
    %20 = tpu.matmul %18, %19, %cst_17 {dimension_numbers = #tpu.dot_dimension_numbers<[1], [0], [0], [1], [0, 0, 1, 1], [], []>} : vector<128x8xbf16>, vector<8x32xbf16>, vector<128x32xf32> -> vector<128x32xf32>
    %21 = arith.truncf %20 : vector<128x32xf32> to vector<128x32xbf16>
    %c1 = arith.constant 1 : index
    %c0_18 = arith.constant 0 : index
    %c0_19 = arith.constant 0 : index
    %22 = vector.load %arg7[%c1, %c0_18, %c0_19] : memref<8x128x32xbf16, #tpu.memory_space<vmem>>, vector<1x128x32xbf16>
    %23 = vector.shape_cast %22 : vector<1x128x32xbf16> to vector<128x32xbf16>
    %24 = vector.shape_cast %21 : vector<128x32xbf16> to vector<1x128x32xbf16>
    tpu.vector_store %arg7[%c1, %c0_18, %c0_19], %24 {strides = array<i32>} : memref<8x128x32xbf16, #tpu.memory_space<vmem>>, vector<1x128x32xbf16>,
    %25 = vector.extract_strided_slice %3 {offsets = [0, 16], sizes = [128, 8], strides = [1, 1]} : vector<128x64xbf16> to vector<128x8xbf16>
    %c16 = arith.constant 16 : index
    %c0_20 = arith.constant 0 : index
    %26 = vector.load %arg4[%c16, %c0_20] : memref<64x32xbf16, #tpu.memory_space<vmem>>, vector<8x32xbf16>
    %cst_21 = arith.constant dense<0.000000e+00> : vector<128x32xf32>
    %27 = tpu.matmul %25, %26, %cst_21 {dimension_numbers = #tpu.dot_dimension_numbers<[1], [0], [0], [1], [0, 0, 1, 1], [], []>} : vector<128x8xbf16>, vector<8x32xbf16>, vector<128x32xf32> -> vector<128x32xf32>
    %28 = arith.truncf %27 : vector<128x32xf32> to vector<128x32xbf16>
    %c2 = arith.constant 2 : index
    %c0_22 = arith.constant 0 : index
    %c0_23 = arith.constant 0 : index
    %29 = vector.load %arg7[%c2, %c0_22, %c0_23] : memref<8x128x32xbf16, #tpu.memory_space<vmem>>, vector<1x128x32xbf16>
    %30 = vector.shape_cast %29 : vector<1x128x32xbf16> to vector<128x32xbf16>
    %31 = vector.shape_cast %28 : vector<128x32xbf16> to vector<1x128x32xbf16>
    tpu.vector_store %arg7[%c2, %c0_22, %c0_23], %31 {strides = array<i32>} : memref<8x128x32xbf16, #tpu.memory_space<vmem>>, vector<1x128x32xbf16>,
    %32 = vector.extract_strided_slice %3 {offsets = [0, 24], sizes = [128, 8], strides = [1, 1]} : vector<128x64xbf16> to vector<128x8xbf16>
    %c24 = arith.constant 24 : index
    %c0_24 = arith.constant 0 : index
    %33 = vector.load %arg4[%c24, %c0_24] : memref<64x32xbf16, #tpu.memory_space<vmem>>, vector<8x32xbf16>
    %cst_25 = arith.constant dense<0.000000e+00> : vector<128x32xf32>
    %34 = tpu.matmul %32, %33, %cst_25 {dimension_numbers = #tpu.dot_dimension_numbers<[1], [0], [0], [1], [0, 0, 1, 1], [], []>} : vector<128x8xbf16>, vector<8x32xbf16>, vector<128x32xf32> -> vector<128x32xf32>
    %35 = arith.truncf %34 : vector<128x32xf32> to vector<128x32xbf16>
    %c3 = arith.constant 3 : index
    %c0_26 = arith.constant 0 : index
    %c0_27 = arith.constant 0 : index
    %36 = vector.load %arg7[%c3, %c0_26, %c0_27] : memref<8x128x32xbf16, #tpu.memory_space<vmem>>, vector<1x128x32xbf16>
    %37 = vector.shape_cast %36 : vector<1x128x32xbf16> to vector<128x32xbf16>
    %38 = vector.shape_cast %35 : vector<128x32xbf16> to vector<1x128x32xbf16>
    tpu.vector_store %arg7[%c3, %c0_26, %c0_27], %38 {strides = array<i32>} : memref<8x128x32xbf16, #tpu.memory_space<vmem>>, vector<1x128x32xbf16>,
    %39 = vector.extract_strided_slice %3 {offsets = [0, 32], sizes = [128, 8], strides = [1, 1]} : vector<128x64xbf16> to vector<128x8xbf16>
    %c32 = arith.constant 32 : index
    %c0_28 = arith.constant 0 : index
    %40 = vector.load %arg4[%c32, %c0_28] : memref<64x32xbf16, #tpu.memory_space<vmem>>, vector<8x32xbf16>
    %cst_29 = arith.constant dense<0.000000e+00> : vector<128x32xf32>
    %41 = tpu.matmul %39, %40, %cst_29 {dimension_numbers = #tpu.dot_dimension_numbers<[1], [0], [0], [1], [0, 0, 1, 1], [], []>} : vector<128x8xbf16>, vector<8x32xbf16>, vector<128x32xf32> -> vector<128x32xf32>
    %42 = arith.truncf %41 : vector<128x32xf32> to vector<128x32xbf16>
    %c4 = arith.constant 4 : index
    %c0_30 = arith.constant 0 : index
    %c0_31 = arith.constant 0 : index
    %43 = vector.load %arg7[%c4, %c0_30, %c0_31] : memref<8x128x32xbf16, #tpu.memory_space<vmem>>, vector<1x128x32xbf16>
    %44 = vector.shape_cast %43 : vector<1x128x32xbf16> to vector<128x32xbf16>
    %45 = vector.shape_cast %42 : vector<128x32xbf16> to vector<1x128x32xbf16>
    tpu.vector_store %arg7[%c4, %c0_30, %c0_31], %45 {strides = array<i32>} : memref<8x128x32xbf16, #tpu.memory_space<vmem>>, vector<1x128x32xbf16>,
    %46 = vector.extract_strided_slice %3 {offsets = [0, 40], sizes = [128, 8], strides = [1, 1]} : vector<128x64xbf16> to vector<128x8xbf16>
    %c40 = arith.constant 40 : index
    %c0_32 = arith.constant 0 : index
    %47 = vector.load %arg4[%c40, %c0_32] : memref<64x32xbf16, #tpu.memory_space<vmem>>, vector<8x32xbf16>
    %cst_33 = arith.constant dense<0.000000e+00> : vector<128x32xf32>
    %48 = tpu.matmul %46, %47, %cst_33 {dimension_numbers = #tpu.dot_dimension_numbers<[1], [0], [0], [1], [0, 0, 1, 1], [], []>} : vector<128x8xbf16>, vector<8x32xbf16>, vector<128x32xf32> -> vector<128x32xf32>
    %49 = arith.truncf %48 : vector<128x32xf32> to vector<128x32xbf16>
    %c5 = arith.constant 5 : index
    %c0_34 = arith.constant 0 : index
    %c0_35 = arith.constant 0 : index
    %50 = vector.load %arg7[%c5, %c0_34, %c0_35] : memref<8x128x32xbf16, #tpu.memory_space<vmem>>, vector<1x128x32xbf16>
    %51 = vector.shape_cast %50 : vector<1x128x32xbf16> to vector<128x32xbf16>
    %52 = vector.shape_cast %49 : vector<128x32xbf16> to vector<1x128x32xbf16>
    tpu.vector_store %arg7[%c5, %c0_34, %c0_35], %52 {strides = array<i32>} : memref<8x128x32xbf16, #tpu.memory_space<vmem>>, vector<1x128x32xbf16>,
    %53 = vector.extract_strided_slice %3 {offsets = [0, 48], sizes = [128, 8], strides = [1, 1]} : vector<128x64xbf16> to vector<128x8xbf16>
    %c48 = arith.constant 48 : index
    %c0_36 = arith.constant 0 : index
    %54 = vector.load %arg4[%c48, %c0_36] : memref<64x32xbf16, #tpu.memory_space<vmem>>, vector<8x32xbf16>
    %cst_37 = arith.constant dense<0.000000e+00> : vector<128x32xf32>
    %55 = tpu.matmul %53, %54, %cst_37 {dimension_numbers = #tpu.dot_dimension_numbers<[1], [0], [0], [1], [0, 0, 1, 1], [], []>} : vector<128x8xbf16>, vector<8x32xbf16>, vector<128x32xf32> -> vector<128x32xf32>
    %56 = arith.truncf %55 : vector<128x32xf32> to vector<128x32xbf16>
    %c6 = arith.constant 6 : index
    %c0_38 = arith.constant 0 : index
    %c0_39 = arith.constant 0 : index
    %57 = vector.load %arg7[%c6, %c0_38, %c0_39] : memref<8x128x32xbf16, #tpu.memory_space<vmem>>, vector<1x128x32xbf16>
    %58 = vector.shape_cast %57 : vector<1x128x32xbf16> to vector<128x32xbf16>
    %59 = vector.shape_cast %56 : vector<128x32xbf16> to vector<1x128x32xbf16>
    tpu.vector_store %arg7[%c6, %c0_38, %c0_39], %59 {strides = array<i32>} : memref<8x128x32xbf16, #tpu.memory_space<vmem>>, vector<1x128x32xbf16>,
    %60 = vector.extract_strided_slice %3 {offsets = [0, 56], sizes = [128, 8], strides = [1, 1]} : vector<128x64xbf16> to vector<128x8xbf16>
    %c56 = arith.constant 56 : index
    %c0_40 = arith.constant 0 : index
    %61 = vector.load %arg4[%c56, %c0_40] : memref<64x32xbf16, #tpu.memory_space<vmem>>, vector<8x32xbf16>
    %cst_41 = arith.constant dense<0.000000e+00> : vector<128x32xf32>
    %62 = tpu.matmul %60, %61, %cst_41 {dimension_numbers = #tpu.dot_dimension_numbers<[1], [0], [0], [1], [0, 0, 1, 1], [], []>} : vector<128x8xbf16>, vector<8x32xbf16>, vector<128x32xf32> -> vector<128x32xf32>
    %63 = arith.truncf %62 : vector<128x32xf32> to vector<128x32xbf16>
    %c7 = arith.constant 7 : index
    %c0_42 = arith.constant 0 : index
    %c0_43 = arith.constant 0 : index
    %64 = vector.load %arg7[%c7, %c0_42, %c0_43] : memref<8x128x32xbf16, #tpu.memory_space<vmem>>, vector<1x128x32xbf16>
    %65 = vector.shape_cast %64 : vector<1x128x32xbf16> to vector<128x32xbf16>
    %66 = vector.shape_cast %63 : vector<128x32xbf16> to vector<1x128x32xbf16>
    tpu.vector_store %arg7[%c7, %c0_42, %c0_43], %66 {strides = array<i32>} : memref<8x128x32xbf16, #tpu.memory_space<vmem>>, vector<1x128x32xbf16>,
    return
  }
  func.func @transform_0(%arg0: i32) -> (i32, i32) {
    %c0_i32 = arith.constant 0 : i32
    %c0_i32_0 = arith.constant 0 : i32
    return %arg0, %c0_i32 : i32, i32
  }
  func.func @transform_1(%arg0: i32) -> (i32, i32) {
    %c0_i32 = arith.constant 0 : i32
    %c0_i32_0 = arith.constant 0 : i32
    %c0_i32_1 = arith.constant 0 : i32
    return %c0_i32, %c0_i32_0 : i32, i32
  }
  func.func @transform_2(%arg0: i32) -> (i32, i32) {
    %c0_i32 = arith.constant 0 : i32
    %c0_i32_0 = arith.constant 0 : i32
    %c0_i32_1 = arith.constant 0 : i32
    return %c0_i32, %c0_i32_0 : i32, i32
  }
  func.func @transform_3(%arg0: i32) -> (i32, i32) {
    %c0_i32 = arith.constant 0 : i32
    %c0_i32_0 = arith.constant 0 : i32
    %c0_i32_1 = arith.constant 0 : i32
    return %c0_i32, %c0_i32_0 : i32, i32
  }
  func.func @transform_4(%arg0: i32) -> (i32, i32) {
    %c0_i32 = arith.constant 0 : i32
    %c0_i32_0 = arith.constant 0 : i32
    return %arg0, %c0_i32 : i32, i32
  }
  func.func @transform_5(%arg0: i32) -> (i32, i32) {
    %c0_i32 = arith.constant 0 : i32
    %c0_i32_0 = arith.constant 0 : i32
    return %c0_i32, %arg0 : i32, i32
  }
  func.func @transform_6(%arg0: i32) -> (i32, i32, i32) {
    %c0_i32 = arith.constant 0 : i32
    %c0_i32_0 = arith.constant 0 : i32
    %c0_i32_1 = arith.constant 0 : i32
    return %c0_i32, %arg0, %c0_i32_0 : i32, i32, i32
  }
}

</mosaic_0001>

<llo_original>
// kernel: tpu_custom_call.1
$region0: #{tpu_custom_call.1}
  #allocation0 [shape = 'u32[]', space=smem, size = 0x4, offset = 0x4, fixed_abs, tag = 'smem constant byte address 0x4 - core index']
  #allocation1 [shape = 'u32[144,128]{1,0:T(1,128)}', space=vmem, size = 0x12000, scoped, tag = 'internal scratch']
  %s0 = inlined_call_operand.vmem [shape: bf16[128,32], index: 0, kind: input, shape index: {}]
  %s1 = inlined_call_operand.vmem [shape: bf16[32,64], index: 1, kind: input, shape index: {}]
  %s2 = inlined_call_operand.vmem [shape: bf16[64,16], index: 2, kind: input, shape index: {}]
  %s3 = inlined_call_operand.vmem [shape: bf16[64,32], index: 3, kind: input, shape index: {}]
  %s4 = inlined_call_operand.vmem [shape: f32[128,8], index: 4, kind: output, shape index: {0}]
  %s5 = inlined_call_operand.hbm [shape: f32[8,128], index: 5, kind: output, shape index: {1}]
  %s6 = inlined_call_operand.vmem [shape: bf16[8,128,32], index: 6, kind: output, shape index: {2}]
  %7 = xla_tuple %s4, %s5, %s6
  %s8 = sld [smem:[#allocation0]]
  $region42: #{tpu_custom_call.1} parent=0
    _
  %s10 = ssub.s32 1, %s8
  %s11 = scalar_select 0, %s10, %s8
  $region1: #{tpu_custom_call.1} parent=0
    #allocation2 [shape = 'u8[4096]{0}', space=vmem, size = 0x1000, scoped, tag = 'output window, operand 1, single buffered']
    #allocation3 [shape = 's32[1]{0}', space=sflag, size = 0x4, scoped, tag = 'scoped memory for tpu_custom_call.1']
    %12 = vsyncpa [#allocation3], 0
    // Predicated region
    $region2: #{tpu_custom_call.1} parent=1 // pred_check
      _
    $region3: #{tpu_custom_call.1} parent=1 // pred_check_branch
      %14 = sbr.rel (0) target = $region5
    $region4: #{tpu_custom_call.1} parent=1 // pred_region
      _
    $region5: #{tpu_custom_call.1} parent=1 // pred_fallthru
      _
    // Predicated region
    $region6: #{tpu_custom_call.1} parent=1 // pred_check
      _
    $region7: #{tpu_custom_call.1} parent=1 // pred_check_branch
      %16 = sbr.rel (0) target = $region9
    $region8: #{tpu_custom_call.1} parent=1 // pred_region
      _
    $region9: #{tpu_custom_call.1} parent=1 // pred_fallthru
      _
    // Predicated region
    $region10: #{tpu_custom_call.1} parent=1 // pred_check
      _
    $region11: #{tpu_custom_call.1} parent=1 // pred_check_branch
      %18 = sbr.rel (0) target = $region13
    $region12: #{tpu_custom_call.1} parent=1 // pred_region
      _
    $region13: #{tpu_custom_call.1} parent=1 // pred_fallthru
      _
    // Predicated region
    $region14: #{tpu_custom_call.1} parent=1 // pred_check
      _
    $region15: #{tpu_custom_call.1} parent=1 // pred_check_branch
      %20 = sbr.rel (0) target = $region17
    $region16: #{tpu_custom_call.1} parent=1 // pred_region
      _
    $region17: #{tpu_custom_call.1} parent=1 // pred_fallthru
      _
    %v22 = vld [vmem:[%s0] sm:$0xf]
    %v23 = vld [vmem:[%s0 + $0x4] sm:$0xf]
    %v24 = vld [vmem:[%s0 + $0x8] sm:$0xf]
    %v25 = vld [vmem:[%s0 + $0xc] sm:$0xf]
    %v26 = vld [vmem:[%s0 + $0x10] sm:$0xf]
    %v27 = vld [vmem:[%s0 + $0x14] sm:$0xf]
    %v28 = vld [vmem:[%s0 + $0x18] sm:$0xf]
    %v29 = vld [vmem:[%s0 + $0x1c] sm:$0xf]
    %v30 = vld [vmem:[%s0 + $0x20] sm:$0xf]
    %v31 = vld [vmem:[%s0 + $0x24] sm:$0xf]
    %v32 = vld [vmem:[%s0 + $0x28] sm:$0xf]
    %v33 = vld [vmem:[%s0 + $0x2c] sm:$0xf]
    %v34 = vld [vmem:[%s0 + $0x30] sm:$0xf]
    %v35 = vld [vmem:[%s0 + $0x34] sm:$0xf]
    %v36 = vld [vmem:[%s0 + $0x38] sm:$0xf]
    %v37 = vld [vmem:[%s0 + $0x3c] sm:$0xf]
    %v38 = vld [vmem:[%s1] sm:$0xf]
    %v39 = vld [vmem:[%s1 + $0x4] sm:$0xf]
    %v40 = vld [vmem:[%s1 + $0x8] sm:$0xf]
    %v41 = vld [vmem:[%s1 + $0xc] sm:$0xf]
    %v58 = vunpack.c.l.b16 %v22
    %v59 = vunpack.c.l.b16 %v23
    %v60 = vunpack.c.l.b16 %v24
    %v61 = vunpack.c.l.b16 %v25
    %v62 = vunpack.c.l.b16 %v26
    %v63 = vunpack.c.l.b16 %v27
    %v64 = vunpack.c.l.b16 %v28
    %v65 = vunpack.c.l.b16 %v29
    %v66 = vunpack.c.l.b16 %v30
    %v67 = vunpack.c.l.b16 %v31
    %v68 = vunpack.c.l.b16 %v32
    %v69 = vunpack.c.l.b16 %v33
    %v70 = vunpack.c.l.b16 %v34
    %v71 = vunpack.c.l.b16 %v35
    %v72 = vunpack.c.l.b16 %v36
    %v73 = vunpack.c.l.b16 %v37
    %v74 = vpack.c.b16 %v59, %v58
    %v75 = vpack.c.b16 %v61, %v60
    %v76 = vpack.c.b16 %v63, %v62
    %v77 = vpack.c.b16 %v65, %v64
    %v78 = vpack.c.b16 %v67, %v66
    %v79 = vpack.c.b16 %v69, %v68
    %v80 = vpack.c.b16 %v71, %v70
    %v81 = vpack.c.b16 %v73, %v72
    %v86 = vunpack.c.l.b16 %v38
    %v87 = vunpack.c.l.b16 %v39
    %v88 = vunpack.c.l.b16 %v40
    %v89 = vunpack.c.l.b16 %v41
    %v90 = vpack.c.b16 %v87, %v86
    %v91 = vpack.c.b16 %v89, %v88
    %vm94 = vcmask 261120
    %v96 = vsel %vm94, %v74, 0
    %v99 = vsel %vm94, %v75, 0
    %v102 = vsel %vm94, %v76, 0
    %v105 = vsel %vm94, %v77, 0
    %v108 = vsel %vm94, %v78, 0
    %v111 = vsel %vm94, %v79, 0
    %v114 = vsel %vm94, %v80, 0
    %v117 = vsel %vm94, %v81, 0
    %119 = vmatprep.subr.bf16.mxu0 0
    %120 = vmatpush1.bf16.msra.mxu0 0
    %121 = vmatprep.subr.bf16.mxu0 0
    %122 = vmatpush1.bf16.msra.mxu0 0
    %123 = vmatprep.subr.bf16.mxu0 0
    %124 = vmatpush1.bf16.msra.mxu0 0
    %125 = vmatprep.subr.bf16.mxu0 0
    %126 = vmatpush1.bf16.msra.mxu0 0
    %127 = vmatprep.subr.bf16.mxu0 0
    %128 = vmatpush1.bf16.msra.mxu0 0
    %129 = vmatprep.subr.bf16.mxu0 0
    %130 = vmatpush1.bf16.msra.mxu0 0
    %131 = vmatprep.subr.bf16.mxu0 0
    %132 = vmatpush1.bf16.msra.mxu0 %v91
    %133 = vmatprep.subr.bf16.mxu0 0
    %134 = vmatpush1.bf16.msra.mxu0 %v90
    %135 = vmatprep.subr.bf16.mxu0 0
    %136 = vmatpush2.bf16.msra.mxu0 0
    %137 = vmatprep.subr.bf16.mxu0 0
    %138 = vmatpush2.bf16.msra.mxu0 0
    %139 = vmatprep.subr.bf16.mxu0 0
    %140 = vmatpush2.bf16.msra.mxu0 0
    %141 = vmatprep.subr.bf16.mxu0 0
    %142 = vmatpush2.bf16.msra.mxu0 0
    %143 = vmatprep.subr.bf16.mxu0 0
    %144 = vmatpush2.bf16.msra.mxu0 0
    %145 = vmatprep.subr.bf16.mxu0 0
    %146 = vmatpush2.bf16.msra.mxu0 0
    %147 = vmatprep.subr.bf16.mxu0 0
    %148 = vmatpush2.bf16.msra.mxu0 0
    %149 = vmatprep.subr.bf16.mxu0 0
    %150 = vmatpush2.bf16.msra.mxu0 0
    %151 = vmatprep.mubr.bf16.mxu0 0
    %152 = vmatmul.mubr.bf16.gmra.mxu0 %v96
    %v153 = vpop.f32.mrf.mxu0
    %v154 = vadd.f32 0.0, %v153
    %v155 = vpop.f32.mrf.mxu0
    %v156 = vpop.f32.mrf.mxu0
    %v157 = vadd.f32 0.0, %v156
    %v158 = vpop.f32.mrf.mxu0
    %159 = vmatprep.mubr.bf16.mxu0 0
    %160 = vmatmul.mubr.bf16.gmra.mxu0 %v99
    %v161 = vpop.f32.mrf.mxu0
    %v162 = vadd.f32 0.0, %v161
    %v163 = vpop.f32.mrf.mxu0
    %v164 = vpop.f32.mrf.mxu0
    %v165 = vadd.f32 0.0, %v164
    %v166 = vpop.f32.mrf.mxu0
    %167 = vmatprep.mubr.bf16.mxu0 0
    %168 = vmatmul.mubr.bf16.gmra.mxu0 %v102
    %v169 = vpop.f32.mrf.mxu0
    %v170 = vadd.f32 0.0, %v169
    %v171 = vpop.f32.mrf.mxu0
    %v172 = vpop.f32.mrf.mxu0
    %v173 = vadd.f32 0.0, %v172
    %v174 = vpop.f32.mrf.mxu0
    %175 = vmatprep.mubr.bf16.mxu0 0
    %176 = vmatmul.mubr.bf16.gmra.mxu0 %v105
    %v177 = vpop.f32.mrf.mxu0
    %v178 = vadd.f32 0.0, %v177
    %v179 = vpop.f32.mrf.mxu0
    %v180 = vpop.f32.mrf.mxu0
    %v181 = vadd.f32 0.0, %v180
    %v182 = vpop.f32.mrf.mxu0
    %183 = vmatprep.mubr.bf16.mxu0 0
    %184 = vmatmul.mubr.bf16.gmra.mxu0 %v108
    %v185 = vpop.f32.mrf.mxu0
    %v186 = vadd.f32 0.0, %v185
    %v187 = vpop.f32.mrf.mxu0
    %v188 = vpop.f32.mrf.mxu0
    %v189 = vadd.f32 0.0, %v188
    %v190 = vpop.f32.mrf.mxu0
    %191 = vmatprep.mubr.bf16.mxu0 0
    %192 = vmatmul.mubr.bf16.gmra.mxu0 %v111
    %v193 = vpop.f32.mrf.mxu0
    %v194 = vadd.f32 0.0, %v193
    %v195 = vpop.f32.mrf.mxu0
    %v196 = vpop.f32.mrf.mxu0
    %v197 = vadd.f32 0.0, %v196
    %v198 = vpop.f32.mrf.mxu0
    %199 = vmatprep.mubr.bf16.mxu0 0
    %200 = vmatmul.mubr.bf16.gmra.mxu0 %v114
    %v201 = vpop.f32.mrf.mxu0
    %v202 = vadd.f32 0.0, %v201
    %v203 = vpop.f32.mrf.mxu0
    %v204 = vpop.f32.mrf.mxu0
    %v205 = vadd.f32 0.0, %v204
    %v206 = vpop.f32.mrf.mxu0
    %207 = vmatprep.mubr.bf16.mxu0 0
    %208 = vmatmul.mubr.bf16.gmra.mxu0 %v117
    %v209 = vpop.f32.mrf.mxu0
    %v210 = vadd.f32 0.0, %v209
    %v211 = vpop.f32.mrf.mxu0
    %v212 = vpop.f32.mrf.mxu0
    %v213 = vadd.f32 0.0, %v212
    %v214 = vpop.f32.mrf.mxu0
    %215 = vdwg.mxu0
    %v216 = vpack.c.bf16 %v157, %v154
    %v217 = vpack.c.bf16 %v165, %v162
    %v218 = vpack.c.bf16 %v173, %v170
    %v219 = vpack.c.bf16 %v181, %v178
    %v220 = vpack.c.bf16 %v189, %v186
    %v221 = vpack.c.bf16 %v197, %v194
    %v222 = vpack.c.bf16 %v205, %v202
    %v223 = vpack.c.bf16 %v213, %v210
    %v224 = vld [vmem:[%s2] sm:$0xf]
    %v225 = vld [vmem:[%s2 + $0x4] sm:$0xf]
    %v226 = vld [vmem:[%s2 + $0x8] sm:$0xf]
    %v227 = vld [vmem:[%s2 + $0xc] sm:$0xf]
    %v228 = vld [vmem:[%s2 + $0x10] sm:$0xf]
    %v229 = vld [vmem:[%s2 + $0x14] sm:$0xf]
    %v230 = vld [vmem:[%s2 + $0x18] sm:$0xf]
    %v231 = vld [vmem:[%s2 + $0x1c] sm:$0xf]
    %v240 = vunpack.c.l.b16 %v224
    %v241 = vunpack.c.l.b16 %v225
    %v242 = vunpack.c.l.b16 %v226
    %v243 = vunpack.c.l.b16 %v227
    %v244 = vunpack.c.l.b16 %v228
    %v245 = vunpack.c.l.b16 %v229
    %v246 = vunpack.c.l.b16 %v230
    %v247 = vunpack.c.l.b16 %v231
    %v248 = vpack.c.b16 %v241, %v240
    %v249 = vpack.c.b16 %v243, %v242
    %v250 = vpack.c.b16 %v245, %v244
    %v251 = vpack.c.b16 %v247, %v246
    %vm256 = vcmask 523264
    %v258 = vsel %vm256, %v216, 0
    %v261 = vsel %vm256, %v217, 0
    %v264 = vsel %vm256, %v218, 0
    %v267 = vsel %vm256, %v219, 0
    %v270 = vsel %vm256, %v220, 0
    %v273 = vsel %vm256, %v221, 0
    %v276 = vsel %vm256, %v222, 0
    %v279 = vsel %vm256, %v223, 0
    %281 = vmatprep.subr.bf16.mxu0 0
    %282 = vmatpush1.bf16.msra.mxu0 0
    %283 = vmatprep.subr.bf16.mxu0 0
    %284 = vmatpush1.bf16.msra.mxu0 0
    %285 = vmatprep.subr.bf16.mxu0 0
    %286 = vmatpush1.bf16.msra.mxu0 0
    %287 = vmatprep.subr.bf16.mxu0 0
    %288 = vmatpush1.bf16.msra.mxu0 0
    %289 = vmatprep.subr.bf16.mxu0 0
    %290 = vmatpush1.bf16.msra.mxu0 %v251
    %291 = vmatprep.subr.bf16.mxu0 0
    %292 = vmatpush1.bf16.msra.mxu0 %v250
    %293 = vmatprep.subr.bf16.mxu0 0
    %294 = vmatpush1.bf16.msra.mxu0 %v249
    %295 = vmatprep.subr.bf16.mxu0 0
    %296 = vmatpush1.bf16.msra.mxu0 %v248
    %297 = vmatprep.subr.bf16.mxu0 0
    %298 = vmatpush2.bf16.msra.mxu0 0
    %299 = vmatprep.subr.bf16.mxu0 0
    %300 = vmatpush2.bf16.msra.mxu0 0
    %301 = vmatprep.subr.bf16.mxu0 0
    %302 = vmatpush2.bf16.msra.mxu0 0
    %303 = vmatprep.subr.bf16.mxu0 0
    %304 = vmatpush2.bf16.msra.mxu0 0
    %305 = vmatprep.subr.bf16.mxu0 0
    %306 = vmatpush2.bf16.msra.mxu0 0
    %307 = vmatprep.subr.bf16.mxu0 0
    %308 = vmatpush2.bf16.msra.mxu0 0
    %309 = vmatprep.subr.bf16.mxu0 0
    %310 = vmatpush2.bf16.msra.mxu0 0
    %311 = vmatprep.subr.bf16.mxu0 0
    %312 = vmatpush2.bf16.msra.mxu0 0
    %313 = vmatprep.mubr.bf16.mxu0 0
    %314 = vmatmul.mubr.bf16.gmra.mxu0 %v258
    %v315 = vpop.f32.mrf.mxu0
    %v316 = vadd.f32 0.0, %v315
    %v317 = vpop.f32.mrf.mxu0
    %v318 = vpop.f32.mrf.mxu0
    %v319 = vadd.f32 0.0, %v318
    %v320 = vpop.f32.mrf.mxu0
    %321 = vmatprep.mubr.bf16.mxu0 0
    %322 = vmatmul.mubr.bf16.gmra.mxu0 %v261
    %v323 = vpop.f32.mrf.mxu0
    %v324 = vadd.f32 0.0, %v323
    %v325 = vpop.f32.mrf.mxu0
    %v326 = vpop.f32.mrf.mxu0
    %v327 = vadd.f32 0.0, %v326
    %v328 = vpop.f32.mrf.mxu0
    %329 = vmatprep.mubr.bf16.mxu0 0
    %330 = vmatmul.mubr.bf16.gmra.mxu0 %v264
    %v331 = vpop.f32.mrf.mxu0
    %v332 = vadd.f32 0.0, %v331
    %v333 = vpop.f32.mrf.mxu0
    %v334 = vpop.f32.mrf.mxu0
    %v335 = vadd.f32 0.0, %v334
    %v336 = vpop.f32.mrf.mxu0
    %337 = vmatprep.mubr.bf16.mxu0 0
    %338 = vmatmul.mubr.bf16.gmra.mxu0 %v267
    %v339 = vpop.f32.mrf.mxu0
    %v340 = vadd.f32 0.0, %v339
    %v341 = vpop.f32.mrf.mxu0
    %v342 = vpop.f32.mrf.mxu0
    %v343 = vadd.f32 0.0, %v342
    %v344 = vpop.f32.mrf.mxu0
    %345 = vmatprep.mubr.bf16.mxu0 0
    %346 = vmatmul.mubr.bf16.gmra.mxu0 %v270
    %v347 = vpop.f32.mrf.mxu0
    %v348 = vadd.f32 0.0, %v347
    %v349 = vpop.f32.mrf.mxu0
    %v350 = vpop.f32.mrf.mxu0
    %v351 = vadd.f32 0.0, %v350
    %v352 = vpop.f32.mrf.mxu0
    %353 = vmatprep.mubr.bf16.mxu0 0
    %354 = vmatmul.mubr.bf16.gmra.mxu0 %v273
    %v355 = vpop.f32.mrf.mxu0
    %v356 = vadd.f32 0.0, %v355
    %v357 = vpop.f32.mrf.mxu0
    %v358 = vpop.f32.mrf.mxu0
    %v359 = vadd.f32 0.0, %v358
    %v360 = vpop.f32.mrf.mxu0
    %361 = vmatprep.mubr.bf16.mxu0 0
    %362 = vmatmul.mubr.bf16.gmra.mxu0 %v276
    %v363 = vpop.f32.mrf.mxu0
    %v364 = vadd.f32 0.0, %v363
    %v365 = vpop.f32.mrf.mxu0
    %v366 = vpop.f32.mrf.mxu0
    %v367 = vadd.f32 0.0, %v366
    %v368 = vpop.f32.mrf.mxu0
    %369 = vmatprep.mubr.bf16.mxu0 0
    %370 = vmatmul.mubr.bf16.gmra.mxu0 %v279
    %v371 = vpop.f32.mrf.mxu0
    %v372 = vadd.f32 0.0, %v371
    %v373 = vpop.f32.mrf.mxu0
    %v374 = vpop.f32.mrf.mxu0
    %v375 = vadd.f32 0.0, %v374
    %v376 = vpop.f32.mrf.mxu0
    %377 = vdwg.mxu0
    %vm378 = vcmask 64512
    %379 = vst.msk [vmem:[%s4] sm:$0xff] %vm378, %v316
    %380 = vst.msk [vmem:[%s4 + $0x8] sm:$0xff] %vm378, %v319
    %381 = vst.msk [vmem:[%s4 + $0x10] sm:$0xff] %vm378, %v324
    %382 = vst.msk [vmem:[%s4 + $0x18] sm:$0xff] %vm378, %v327
    %383 = vst.msk [vmem:[%s4 + $0x20] sm:$0xff] %vm378, %v332
    %384 = vst.msk [vmem:[%s4 + $0x28] sm:$0xff] %vm378, %v335
    %385 = vst.msk [vmem:[%s4 + $0x30] sm:$0xff] %vm378, %v340
    %386 = vst.msk [vmem:[%s4 + $0x38] sm:$0xff] %vm378, %v343
    %387 = vst.msk [vmem:[%s4 + $0x40] sm:$0xff] %vm378, %v348
    %388 = vst.msk [vmem:[%s4 + $0x48] sm:$0xff] %vm378, %v351
    %389 = vst.msk [vmem:[%s4 + $0x50] sm:$0xff] %vm378, %v356
    %390 = vst.msk [vmem:[%s4 + $0x58] sm:$0xff] %vm378, %v359
    %391 = vst.msk [vmem:[%s4 + $0x60] sm:$0xff] %vm378, %v364
    %392 = vst.msk [vmem:[%s4 + $0x68] sm:$0xff] %vm378, %v367
    %393 = vst.msk [vmem:[%s4 + $0x70] sm:$0xff] %vm378, %v372
    %394 = vst.msk [vmem:[%s4 + $0x78] sm:$0xff] %vm378, %v375
    %411 = vrot.lane.b32.xlu0 %v316, 120
    %v412 = vpop.permute.xlu0 %411
    %413 = vrot.lane.b32.xlu0 %v319, 120
    %v414 = vpop.permute.xlu0 %413
    %415 = vrot.lane.b32.xlu0 %v324, 120
    %v416 = vpop.permute.xlu0 %415
    %417 = vrot.lane.b32.xlu0 %v327, 120
    %v418 = vpop.permute.xlu0 %417
    %419 = vrot.lane.b32.xlu0 %v332, 120
    %v420 = vpop.permute.xlu0 %419
    %421 = vrot.lane.b32.xlu0 %v335, 120
    %v422 = vpop.permute.xlu0 %421
    %423 = vrot.lane.b32.xlu0 %v340, 120
    %v424 = vpop.permute.xlu0 %423
    %425 = vrot.lane.b32.xlu0 %v343, 120
    %v426 = vpop.permute.xlu0 %425
    %427 = vrot.lane.b32.xlu0 %v348, 120
    %v428 = vpop.permute.xlu0 %427
    %429 = vrot.lane.b32.xlu0 %v351, 120
    %v430 = vpop.permute.xlu0 %429
    %431 = vrot.lane.b32.xlu0 %v356, 120
    %v432 = vpop.permute.xlu0 %431
    %433 = vrot.lane.b32.xlu0 %v359, 120
    %v434 = vpop.permute.xlu0 %433
    %435 = vrot.lane.b32.xlu0 %v364, 120
    %v436 = vpop.permute.xlu0 %435
    %437 = vrot.lane.b32.xlu0 %v367, 120
    %v438 = vpop.permute.xlu0 %437
    %439 = vrot.lane.b32.xlu0 %v372, 120
    %v440 = vpop.permute.xlu0 %439
    %441 = vrot.lane.b32.xlu0 %v375, 120
    %v442 = vpop.permute.xlu0 %441
    %459 = vxpose.xlu0.b32.start [1/16] %v412, 128
    %460 = vxpose.xlu0.b32.cont [2/16] %v414, 128
    %461 = vxpose.xlu0.b32.cont [3/16] %v416, 128
    %462 = vxpose.xlu0.b32.cont [4/16] %v418, 128
    %463 = vxpose.xlu0.b32.cont [5/16] %v420, 128
    %464 = vxpose.xlu0.b32.cont [6/16] %v422, 128
    %465 = vxpose.xlu0.b32.cont [7/16] %v424, 128
    %466 = vxpose.xlu0.b32.cont [8/16] %v426, 128
    %467 = vxpose.xlu0.b32.cont [9/16] %v428, 128
    %468 = vxpose.xlu0.b32.cont [10/16] %v430, 128
    %469 = vxpose.xlu0.b32.cont [11/16] %v432, 128
    %470 = vxpose.xlu0.b32.cont [12/16] %v434, 128
    %471 = vxpose.xlu0.b32.cont [13/16] %v436, 128
    %472 = vxpose.xlu0.b32.cont [14/16] %v438, 128
    %473 = vxpose.xlu0.b32.cont [15/16] %v440, 128
    %474 = vxpose.xlu0.b32.end [16/16] %v442, 128
    %v475 = vpop.trf.xlu0
    %v476 = vpop.trf.xlu0
    %v477 = vpop.trf.xlu0
    %v478 = vpop.trf.xlu0
    %v479 = vpop.trf.xlu0
    %v480 = vpop.trf.xlu0
    %v481 = vpop.trf.xlu0
    %v482 = vpop.trf.xlu0
    %v483 = vpop.trf.xlu0
    %v484 = vpop.trf.xlu0
    %v485 = vpop.trf.xlu0
    %v486 = vpop.trf.xlu0
    %v487 = vpop.trf.xlu0
    %v488 = vpop.trf.xlu0
    %v489 = vpop.trf.xlu0
    %v490 = vpop.trf.xlu0
    %491 = vst [vmem:[#allocation2] sm:$0xff] %v475
    %v492 = vld [vmem:[%s3] sm:$0xf]
    %v493 = vsel %vm378, %v216, 0
    %v495 = vsel %vm378, %v217, 0
    %v497 = vsel %vm378, %v218, 0
    %v499 = vsel %vm378, %v219, 0
    %v501 = vsel %vm378, %v220, 0
    %v503 = vsel %vm378, %v221, 0
    %v505 = vsel %vm378, %v222, 0
    %v507 = vsel %vm378, %v223, 0
    %vm509 = vcmask 1043456
    %v511 = vsel %vm509, %v492, 0
    %513 = vmatprep.subr.bf16.mxu0 0
    %514 = vmatpush1.bf16.msra.mxu0 0
    %515 = vmatprep.subr.bf16.mxu0 0
    %516 = vmatpush1.bf16.msra.mxu0 0
    %517 = vmatprep.subr.bf16.mxu0 0
    %518 = vmatpush1.bf16.msra.mxu0 0
    %519 = vmatprep.subr.bf16.mxu0 0
    %520 = vmatpush1.bf16.msra.mxu0 0
    %521 = vmatprep.subr.bf16.mxu0 0
    %522 = vmatpush1.bf16.msra.mxu0 0
    %523 = vmatprep.subr.bf16.mxu0 0
    %524 = vmatpush1.bf16.msra.mxu0 0
    %525 = vmatprep.subr.bf16.mxu0 0
    %526 = vmatpush1.bf16.msra.mxu0 0
    %527 = vmatprep.subr.bf16.mxu0 0
    %528 = vmatpush1.bf16.msra.mxu0 %v511
    %529 = vmatprep.subr.bf16.mxu0 0
    %530 = vmatpush2.bf16.msra.mxu0 0
    %531 = vmatprep.subr.bf16.mxu0 0
    %532 = vmatpush2.bf16.msra.mxu0 0
    %533 = vmatprep.subr.bf16.mxu0 0
    %534 = vmatpush2.bf16.msra.mxu0 0
    %535 = vmatprep.subr.bf16.mxu0 0
    %536 = vmatpush2.bf16.msra.mxu0 0
    %537 = vmatprep.subr.bf16.mxu0 0
    %538 = vmatpush2.bf16.msra.mxu0 0
    %539 = vmatprep.subr.bf16.mxu0 0
    %540 = vmatpush2.bf16.msra.mxu0 0
    %541 = vmatprep.subr.bf16.mxu0 0
    %542 = vmatpush2.bf16.msra.mxu0 0
    %543 = vmatprep.subr.bf16.mxu0 0
    %544 = vmatpush2.bf16.msra.mxu0 0
    %545 = vmatprep.mubr.bf16.mxu0 0
    %546 = vmatmul.mubr.bf16.gmra.mxu0 %v493
    %v547 = vpop.f32.mrf.mxu0
    %v548 = vadd.f32 0.0, %v547
    %v549 = vpop.f32.mrf.mxu0
    %v550 = vpop.f32.mrf.mxu0
    %v551 = vadd.f32 0.0, %v550
    %v552 = vpop.f32.mrf.mxu0
    %553 = vmatprep.mubr.bf16.mxu0 0
    %554 = vmatmul.mubr.bf16.gmra.mxu0 %v495
    %v555 = vpop.f32.mrf.mxu0
    %v556 = vadd.f32 0.0, %v555
    %v557 = vpop.f32.mrf.mxu0
    %v558 = vpop.f32.mrf.mxu0
    %v559 = vadd.f32 0.0, %v558
    %v560 = vpop.f32.mrf.mxu0
    %561 = vmatprep.mubr.bf16.mxu0 0
    %562 = vmatmul.mubr.bf16.gmra.mxu0 %v497
    %v563 = vpop.f32.mrf.mxu0
    %v564 = vadd.f32 0.0, %v563
    %v565 = vpop.f32.mrf.mxu0
    %v566 = vpop.f32.mrf.mxu0
    %v567 = vadd.f32 0.0, %v566
    %v568 = vpop.f32.mrf.mxu0
    %569 = vmatprep.mubr.bf16.mxu0 0
    %570 = vmatmul.mubr.bf16.gmra.mxu0 %v499
    %v571 = vpop.f32.mrf.mxu0
    %v572 = vadd.f32 0.0, %v571
    %v573 = vpop.f32.mrf.mxu0
    %v574 = vpop.f32.mrf.mxu0
    %v575 = vadd.f32 0.0, %v574
    %v576 = vpop.f32.mrf.mxu0
    %577 = vmatprep.mubr.bf16.mxu0 0
    %578 = vmatmul.mubr.bf16.gmra.mxu0 %v501
    %v579 = vpop.f32.mrf.mxu0
    %v580 = vadd.f32 0.0, %v579
    %v581 = vpop.f32.mrf.mxu0
    %v582 = vpop.f32.mrf.mxu0
    %v583 = vadd.f32 0.0, %v582
    %v584 = vpop.f32.mrf.mxu0
    %585 = vmatprep.mubr.bf16.mxu0 0
    %586 = vmatmul.mubr.bf16.gmra.mxu0 %v503
    %v587 = vpop.f32.mrf.mxu0
    %v588 = vadd.f32 0.0, %v587
    %v589 = vpop.f32.mrf.mxu0
    %v590 = vpop.f32.mrf.mxu0
    %v591 = vadd.f32 0.0, %v590
    %v592 = vpop.f32.mrf.mxu0
    %593 = vmatprep.mubr.bf16.mxu0 0
    %594 = vmatmul.mubr.bf16.gmra.mxu0 %v505
    %v595 = vpop.f32.mrf.mxu0
    %v596 = vadd.f32 0.0, %v595
    %v597 = vpop.f32.mrf.mxu0
    %v598 = vpop.f32.mrf.mxu0
    %v599 = vadd.f32 0.0, %v598
    %v600 = vpop.f32.mrf.mxu0
    %601 = vmatprep.mubr.bf16.mxu0 0
    %602 = vmatmul.mubr.bf16.gmra.mxu0 %v507
    %v603 = vpop.f32.mrf.mxu0
    %v604 = vadd.f32 0.0, %v603
    %v605 = vpop.f32.mrf.mxu0
    %v606 = vpop.f32.mrf.mxu0
    %v607 = vadd.f32 0.0, %v606
    %v608 = vpop.f32.mrf.mxu0
    %609 = vdwg.mxu0
    %v610 = vpack.c.bf16 %v551, %v548
    %v611 = vpack.c.bf16 %v559, %v556
    %v612 = vpack.c.bf16 %v567, %v564
    %v613 = vpack.c.bf16 %v575, %v572
    %v614 = vpack.c.bf16 %v583, %v580
    %v615 = vpack.c.bf16 %v591, %v588
    %v616 = vpack.c.bf16 %v599, %v596
    %v617 = vpack.c.bf16 %v607, %v604
    %v626 = vunpack.c.l.b16 %v610
    %v627 = vunpack.c.h.b16 %v610
    %v628 = vunpack.c.l.b16 %v611
    %v629 = vunpack.c.h.b16 %v611
    %v630 = vunpack.c.l.b16 %v612
    %v631 = vunpack.c.h.b16 %v612
    %v632 = vunpack.c.l.b16 %v613
    %v633 = vunpack.c.h.b16 %v613
    %v634 = vunpack.c.l.b16 %v614
    %v635 = vunpack.c.h.b16 %v614
    %v636 = vunpack.c.l.b16 %v615
    %v637 = vunpack.c.h.b16 %v615
    %v638 = vunpack.c.l.b16 %v616
    %v639 = vunpack.c.h.b16 %v616
    %v640 = vunpack.c.l.b16 %v617
    %v641 = vunpack.c.h.b16 %v617
    %v642 = vpack.c.b16 %v626, %v626
    %v643 = vpack.c.b16 %v627, %v627
    %v644 = vpack.c.b16 %v628, %v628
    %v645 = vpack.c.b16 %v629, %v629
    %v646 = vpack.c.b16 %v630, %v630
    %v647 = vpack.c.b16 %v631, %v631
    %v648 = vpack.c.b16 %v632, %v632
    %v649 = vpack.c.b16 %v633, %v633
    %v650 = vpack.c.b16 %v634, %v634
    %v651 = vpack.c.b16 %v635, %v635
    %v652 = vpack.c.b16 %v636, %v636
    %v653 = vpack.c.b16 %v637, %v637
    %v654 = vpack.c.b16 %v638, %v638
    %v655 = vpack.c.b16 %v639, %v639
    %v656 = vpack.c.b16 %v640, %v640
    %v657 = vpack.c.b16 %v641, %v641
    %vm674 = vcmask 257024
    %675 = vst.msk [vmem:[%s6] sm:$0xf] %vm674, %v642
    %676 = vst.msk [vmem:[%s6 + $0x4] sm:$0xf] %vm674, %v643
    %677 = vst.msk [vmem:[%s6 + $0x8] sm:$0xf] %vm674, %v644
    %678 = vst.msk [vmem:[%s6 + $0xc] sm:$0xf] %vm674, %v645
    %679 = vst.msk [vmem:[%s6 + $0x10] sm:$0xf] %vm674, %v646
    %680 = vst.msk [vmem:[%s6 + $0x14] sm:$0xf] %vm674, %v647
    %681 = vst.msk [vmem:[%s6 + $0x18] sm:$0xf] %vm674, %v648
    %682 = vst.msk [vmem:[%s6 + $0x1c] sm:$0xf] %vm674, %v649
    %683 = vst.msk [vmem:[%s6 + $0x20] sm:$0xf] %vm674, %v650
    %684 = vst.msk [vmem:[%s6 + $0x24] sm:$0xf] %vm674, %v651
    %685 = vst.msk [vmem:[%s6 + $0x28] sm:$0xf] %vm674, %v652
    %686 = vst.msk [vmem:[%s6 + $0x2c] sm:$0xf] %vm674, %v653
    %687 = vst.msk [vmem:[%s6 + $0x30] sm:$0xf] %vm674, %v654
    %688 = vst.msk [vmem:[%s6 + $0x34] sm:$0xf] %vm674, %v655
    %689 = vst.msk [vmem:[%s6 + $0x38] sm:$0xf] %vm674, %v656
    %690 = vst.msk [vmem:[%s6 + $0x3c] sm:$0xf] %vm674, %v657
    %v691 = vld [vmem:[%s3 + $0x4] sm:$0xf]
    %700 = vrot.lane.b32.xlu0 %v216, 120
    %v701 = vpop.permute.xlu0 %700
    %702 = vrot.lane.b32.xlu0 %v217, 120
    %v703 = vpop.permute.xlu0 %702
    %704 = vrot.lane.b32.xlu0 %v218, 120
    %v705 = vpop.permute.xlu0 %704
    %706 = vrot.lane.b32.xlu0 %v219, 120
    %v707 = vpop.permute.xlu0 %706
    %708 = vrot.lane.b32.xlu0 %v220, 120
    %v709 = vpop.permute.xlu0 %708
    %710 = vrot.lane.b32.xlu0 %v221, 120
    %v711 = vpop.permute.xlu0 %710
    %712 = vrot.lane.b32.xlu0 %v222, 120
    %v713 = vpop.permute.xlu0 %712
    %714 = vrot.lane.b32.xlu0 %v223, 120
    %v715 = vpop.permute.xlu0 %714
    %v717 = vsel %vm378, %v701, 0
    %v720 = vsel %vm378, %v703, 0
    %v723 = vsel %vm378, %v705, 0
    %v726 = vsel %vm378, %v707, 0
    %v729 = vsel %vm378, %v709, 0
    %v732 = vsel %vm378, %v711, 0
    %v735 = vsel %vm378, %v713, 0
    %v738 = vsel %vm378, %v715, 0
    %v741 = vsel %vm509, %v691, 0
    %743 = vmatprep.subr.bf16.mxu0 0
    %744 = vmatpush1.bf16.msra.mxu0 0
    %745 = vmatprep.subr.bf16.mxu0 0
    %746 = vmatpush1.bf16.msra.mxu0 0
    %747 = vmatprep.subr.bf16.mxu0 0
    %748 = vmatpush1.bf16.msra.mxu0 0
    %749 = vmatprep.subr.bf16.mxu0 0
    %750 = vmatpush1.bf16.msra.mxu0 0
    %751 = vmatprep.subr.bf16.mxu0 0
    %752 = vmatpush1.bf16.msra.mxu0 0
    %753 = vmatprep.subr.bf16.mxu0 0
    %754 = vmatpush1.bf16.msra.mxu0 0
    %755 = vmatprep.subr.bf16.mxu0 0
    %756 = vmatpush1.bf16.msra.mxu0 0
    %757 = vmatprep.subr.bf16.mxu0 0
    %758 = vmatpush1.bf16.msra.mxu0 %v741
    %759 = vmatprep.subr.bf16.mxu0 0
    %760 = vmatpush2.bf16.msra.mxu0 0
    %761 = vmatprep.subr.bf16.mxu0 0
    %762 = vmatpush2.bf16.msra.mxu0 0
    %763 = vmatprep.subr.bf16.mxu0 0
    %764 = vmatpush2.bf16.msra.mxu0 0
    %765 = vmatprep.subr.bf16.mxu0 0
    %766 = vmatpush2.bf16.msra.mxu0 0
    %767 = vmatprep.subr.bf16.mxu0 0
    %768 = vmatpush2.bf16.msra.mxu0 0
    %769 = vmatprep.subr.bf16.mxu0 0
    %770 = vmatpush2.bf16.msra.mxu0 0
    %771 = vmatprep.subr.bf16.mxu0 0
    %772 = vmatpush2.bf16.msra.mxu0 0
    %773 = vmatprep.subr.bf16.mxu0 0
    %774 = vmatpush2.bf16.msra.mxu0 0
    %775 = vmatprep.mubr.bf16.mxu0 0
    %776 = vmatmul.mubr.bf16.gmra.mxu0 %v717
    %v777 = vpop.f32.mrf.mxu0
    %v778 = vadd.f32 0.0, %v777
    %v779 = vpop.f32.mrf.mxu0
    %v780 = vpop.f32.mrf.mxu0
    %v781 = vadd.f32 0.0, %v780
    %v782 = vpop.f32.mrf.mxu0
    %783 = vmatprep.mubr.bf16.mxu0 0
    %784 = vmatmul.mubr.bf16.gmra.mxu0 %v720
    %v785 = vpop.f32.mrf.mxu0
    %v786 = vadd.f32 0.0, %v785
    %v787 = vpop.f32.mrf.mxu0
    %v788 = vpop.f32.mrf.mxu0
    %v789 = vadd.f32 0.0, %v788
    %v790 = vpop.f32.mrf.mxu0
    %791 = vmatprep.mubr.bf16.mxu0 0
    %792 = vmatmul.mubr.bf16.gmra.mxu0 %v723
    %v793 = vpop.f32.mrf.mxu0
    %v794 = vadd.f32 0.0, %v793
    %v795 = vpop.f32.mrf.mxu0
    %v796 = vpop.f32.mrf.mxu0
    %v797 = vadd.f32 0.0, %v796
    %v798 = vpop.f32.mrf.mxu0
    %799 = vmatprep.mubr.bf16.mxu0 0
    %800 = vmatmul.mubr.bf16.gmra.mxu0 %v726
    %v801 = vpop.f32.mrf.mxu0
    %v802 = vadd.f32 0.0, %v801
    %v803 = vpop.f32.mrf.mxu0
    %v804 = vpop.f32.mrf.mxu0
    %v805 = vadd.f32 0.0, %v804
    %v806 = vpop.f32.mrf.mxu0
    %807 = vmatprep.mubr.bf16.mxu0 0
    %808 = vmatmul.mubr.bf16.gmra.mxu0 %v729
    %v809 = vpop.f32.mrf.mxu0
    %v810 = vadd.f32 0.0, %v809
    %v811 = vpop.f32.mrf.mxu0
    %v812 = vpop.f32.mrf.mxu0
    %v813 = vadd.f32 0.0, %v812
    %v814 = vpop.f32.mrf.mxu0
    %815 = vmatprep.mubr.bf16.mxu0 0
    %816 = vmatmul.mubr.bf16.gmra.mxu0 %v732
    %v817 = vpop.f32.mrf.mxu0
    %v818 = vadd.f32 0.0, %v817
    %v819 = vpop.f32.mrf.mxu0
    %v820 = vpop.f32.mrf.mxu0
    %v821 = vadd.f32 0.0, %v820
    %v822 = vpop.f32.mrf.mxu0
    %823 = vmatprep.mubr.bf16.mxu0 0
    %824 = vmatmul.mubr.bf16.gmra.mxu0 %v735
    %v825 = vpop.f32.mrf.mxu0
    %v826 = vadd.f32 0.0, %v825
    %v827 = vpop.f32.mrf.mxu0
    %v828 = vpop.f32.mrf.mxu0
    %v829 = vadd.f32 0.0, %v828
    %v830 = vpop.f32.mrf.mxu0
    %831 = vmatprep.mubr.bf16.mxu0 0
    %832 = vmatmul.mubr.bf16.gmra.mxu0 %v738
    %v833 = vpop.f32.mrf.mxu0
    %v834 = vadd.f32 0.0, %v833
    %v835 = vpop.f32.mrf.mxu0
    %v836 = vpop.f32.mrf.mxu0
    %v837 = vadd.f32 0.0, %v836
    %v838 = vpop.f32.mrf.mxu0
    %839 = vdwg.mxu0
    %v840 = vpack.c.bf16 %v781, %v778
    %v841 = vpack.c.bf16 %v789, %v786
    %v842 = vpack.c.bf16 %v797, %v794
    %v843 = vpack.c.bf16 %v805, %v802
    %v844 = vpack.c.bf16 %v813, %v810
    %v845 = vpack.c.bf16 %v821, %v818
    %v846 = vpack.c.bf16 %v829, %v826
    %v847 = vpack.c.bf16 %v837, %v834
    %v856 = vunpack.c.l.b16 %v840
    %v857 = vunpack.c.h.b16 %v840
    %v858 = vunpack.c.l.b16 %v841
    %v859 = vunpack.c.h.b16 %v841
    %v860 = vunpack.c.l.b16 %v842
    %v861 = vunpack.c.h.b16 %v842
    %v862 = vunpack.c.l.b16 %v843
    %v863 = vunpack.c.h.b16 %v843
    %v864 = vunpack.c.l.b16 %v844
    %v865 = vunpack.c.h.b16 %v844
    %v866 = vunpack.c.l.b16 %v845
    %v867 = vunpack.c.h.b16 %v845
    %v868 = vunpack.c.l.b16 %v846
    %v869 = vunpack.c.h.b16 %v846
    %v870 = vunpack.c.l.b16 %v847
    %v871 = vunpack.c.h.b16 %v847
    %v872 = vpack.c.b16 %v856, %v856
    %v873 = vpack.c.b16 %v857, %v857
    %v874 = vpack.c.b16 %v858, %v858
    %v875 = vpack.c.b16 %v859, %v859
    %v876 = vpack.c.b16 %v860, %v860
    %v877 = vpack.c.b16 %v861, %v861
    %v878 = vpack.c.b16 %v862, %v862
    %v879 = vpack.c.b16 %v863, %v863
    %v880 = vpack.c.b16 %v864, %v864
    %v881 = vpack.c.b16 %v865, %v865
    %v882 = vpack.c.b16 %v866, %v866
    %v883 = vpack.c.b16 %v867, %v867
    %v884 = vpack.c.b16 %v868, %v868
    %v885 = vpack.c.b16 %v869, %v869
    %v886 = vpack.c.b16 %v870, %v870
    %v887 = vpack.c.b16 %v871, %v871
    %s904 = scalar_lea.vmem %s6, 64
    %905 = vst.msk [vmem:[%s904] sm:$0xf] %vm674, %v872
    %906 = vst.msk [vmem:[%s904 + $0x4] sm:$0xf] %vm674, %v873
    %907 = vst.msk [vmem:[%s904 + $0x8] sm:$0xf] %vm674, %v874
    %908 = vst.msk [vmem:[%s904 + $0xc] sm:$0xf] %vm674, %v875
    %909 = vst.msk [vmem:[%s904 + $0x10] sm:$0xf] %vm674, %v876
    %910 = vst.msk [vmem:[%s904 + $0x14] sm:$0xf] %vm674, %v877
    %911 = vst.msk [vmem:[%s904 + $0x18] sm:$0xf] %vm674, %v878
    %912 = vst.msk [vmem:[%s904 + $0x1c] sm:$0xf] %vm674, %v879
    %913 = vst.msk [vmem:[%s904 + $0x20] sm:$0xf] %vm674, %v880
    %914 = vst.msk [vmem:[%s904 + $0x24] sm:$0xf] %vm674, %v881
    %915 = vst.msk [vmem:[%s904 + $0x28] sm:$0xf] %vm674, %v882
    %916 = vst.msk [vmem:[%s904 + $0x2c] sm:$0xf] %vm674, %v883
    %917 = vst.msk [vmem:[%s904 + $0x30] sm:$0xf] %vm674, %v884
    %918 = vst.msk [vmem:[%s904 + $0x34] sm:$0xf] %vm674, %v885
    %919 = vst.msk [vmem:[%s904 + $0x38] sm:$0xf] %vm674, %v886
    %920 = vst.msk [vmem:[%s904 + $0x3c] sm:$0xf] %vm674, %v887
    %v921 = vld [vmem:[%s3 + $0x8] sm:$0xf]
    %922 = vrot.lane.b32.xlu0 %v216, 112
    %v923 = vpop.permute.xlu0 %922
    %924 = vrot.lane.b32.xlu0 %v217, 112
    %v925 = vpop.permute.xlu0 %924
    %926 = vrot.lane.b32.xlu0 %v218, 112
    %v927 = vpop.permute.xlu0 %926
    %928 = vrot.lane.b32.xlu0 %v219, 112
    %v929 = vpop.permute.xlu0 %928
    %930 = vrot.lane.b32.xlu0 %v220, 112
    %v931 = vpop.permute.xlu0 %930
    %932 = vrot.lane.b32.xlu0 %v221, 112
    %v933 = vpop.permute.xlu0 %932
    %934 = vrot.lane.b32.xlu0 %v222, 112
    %v935 = vpop.permute.xlu0 %934
    %936 = vrot.lane.b32.xlu0 %v223, 112
    %v937 = vpop.permute.xlu0 %936
    %v939 = vsel %vm378, %v923, 0
    %v942 = vsel %vm378, %v925, 0
    %v945 = vsel %vm378, %v927, 0
    %v948 = vsel %vm378, %v929, 0
    %v951 = vsel %vm378, %v931, 0
    %v954 = vsel %vm378, %v933, 0
    %v957 = vsel %vm378, %v935, 0
    %v960 = vsel %vm378, %v937, 0
    %v963 = vsel %vm509, %v921, 0
    %965 = vmatprep.subr.bf16.mxu0 0
    %966 = vmatpush1.bf16.msra.mxu0 0
    %967 = vmatprep.subr.bf16.mxu0 0
    %968 = vmatpush1.bf16.msra.mxu0 0
    %969 = vmatprep.subr.bf16.mxu0 0
    %970 = vmatpush1.bf16.msra.mxu0 0
    %971 = vmatprep.subr.bf16.mxu0 0
    %972 = vmatpush1.bf16.msra.mxu0 0
    %973 = vmatprep.subr.bf16.mxu0 0
    %974 = vmatpush1.bf16.msra.mxu0 0
    %975 = vmatprep.subr.bf16.mxu0 0
    %976 = vmatpush1.bf16.msra.mxu0 0
    %977 = vmatprep.subr.bf16.mxu0 0
    %978 = vmatpush1.bf16.msra.mxu0 0
    %979 = vmatprep.subr.bf16.mxu0 0
    %980 = vmatpush1.bf16.msra.mxu0 %v963
    %981 = vmatprep.subr.bf16.mxu0 0
    %982 = vmatpush2.bf16.msra.mxu0 0
    %983 = vmatprep.subr.bf16.mxu0 0
    %984 = vmatpush2.bf16.msra.mxu0 0
    %985 = vmatprep.subr.bf16.mxu0 0
    %986 = vmatpush2.bf16.msra.mxu0 0
    %987 = vmatprep.subr.bf16.mxu0 0
    %988 = vmatpush2.bf16.msra.mxu0 0
    %989 = vmatprep.subr.bf16.mxu0 0
    %990 = vmatpush2.bf16.msra.mxu0 0
    %991 = vmatprep.subr.bf16.mxu0 0
    %992 = vmatpush2.bf16.msra.mxu0 0
    %993 = vmatprep.subr.bf16.mxu0 0
    %994 = vmatpush2.bf16.msra.mxu0 0
    %995 = vmatprep.subr.bf16.mxu0 0
    %996 = vmatpush2.bf16.msra.mxu0 0
    %997 = vmatprep.mubr.bf16.mxu0 0
    %998 = vmatmul.mubr.bf16.gmra.mxu0 %v939
    %v999 = vpop.f32.mrf.mxu0
    %v1000 = vadd.f32 0.0, %v999
    %v1001 = vpop.f32.mrf.mxu0
    %v1002 = vpop.f32.mrf.mxu0
    %v1003 = vadd.f32 0.0, %v1002
    %v1004 = vpop.f32.mrf.mxu0
    %1005 = vmatprep.mubr.bf16.mxu0 0
    %1006 = vmatmul.mubr.bf16.gmra.mxu0 %v942
    %v1007 = vpop.f32.mrf.mxu0
    %v1008 = vadd.f32 0.0, %v1007
    %v1009 = vpop.f32.mrf.mxu0
    %v1010 = vpop.f32.mrf.mxu0
    %v1011 = vadd.f32 0.0, %v1010
    %v1012 = vpop.f32.mrf.mxu0
    %1013 = vmatprep.mubr.bf16.mxu0 0
    %1014 = vmatmul.mubr.bf16.gmra.mxu0 %v945
    %v1015 = vpop.f32.mrf.mxu0
    %v1016 = vadd.f32 0.0, %v1015
    %v1017 = vpop.f32.mrf.mxu0
    %v1018 = vpop.f32.mrf.mxu0
    %v1019 = vadd.f32 0.0, %v1018
    %v1020 = vpop.f32.mrf.mxu0
    %1021 = vmatprep.mubr.bf16.mxu0 0
    %1022 = vmatmul.mubr.bf16.gmra.mxu0 %v948
    %v1023 = vpop.f32.mrf.mxu0
    %v1024 = vadd.f32 0.0, %v1023
    %v1025 = vpop.f32.mrf.mxu0
    %v1026 = vpop.f32.mrf.mxu0
    %v1027 = vadd.f32 0.0, %v1026
    %v1028 = vpop.f32.mrf.mxu0
    %1029 = vmatprep.mubr.bf16.mxu0 0
    %1030 = vmatmul.mubr.bf16.gmra.mxu0 %v951
    %v1031 = vpop.f32.mrf.mxu0
    %v1032 = vadd.f32 0.0, %v1031
    %v1033 = vpop.f32.mrf.mxu0
    %v1034 = vpop.f32.mrf.mxu0
    %v1035 = vadd.f32 0.0, %v1034
    %v1036 = vpop.f32.mrf.mxu0
    %1037 = vmatprep.mubr.bf16.mxu0 0
    %1038 = vmatmul.mubr.bf16.gmra.mxu0 %v954
    %v1039 = vpop.f32.mrf.mxu0
    %v1040 = vadd.f32 0.0, %v1039
    %v1041 = vpop.f32.mrf.mxu0
    %v1042 = vpop.f32.mrf.mxu0
    %v1043 = vadd.f32 0.0, %v1042
    %v1044 = vpop.f32.mrf.mxu0
    %1045 = vmatprep.mubr.bf16.mxu0 0
    %1046 = vmatmul.mubr.bf16.gmra.mxu0 %v957
    %v1047 = vpop.f32.mrf.mxu0
    %v1048 = vadd.f32 0.0, %v1047
    %v1049 = vpop.f32.mrf.mxu0
    %v1050 = vpop.f32.mrf.mxu0
    %v1051 = vadd.f32 0.0, %v1050
    %v1052 = vpop.f32.mrf.mxu0
    %1053 = vmatprep.mubr.bf16.mxu0 0
    %1054 = vmatmul.mubr.bf16.gmra.mxu0 %v960
    %v1055 = vpop.f32.mrf.mxu0
    %v1056 = vadd.f32 0.0, %v1055
    %v1057 = vpop.f32.mrf.mxu0
    %v1058 = vpop.f32.mrf.mxu0
    %v1059 = vadd.f32 0.0, %v1058
    %v1060 = vpop.f32.mrf.mxu0
    %1061 = vdwg.mxu0
    %v1062 = vpack.c.bf16 %v1003, %v1000
    %v1063 = vpack.c.bf16 %v1011, %v1008
    %v1064 = vpack.c.bf16 %v1019, %v1016
    %v1065 = vpack.c.bf16 %v1027, %v1024
    %v1066 = vpack.c.bf16 %v1035, %v1032
    %v1067 = vpack.c.bf16 %v1043, %v1040
    %v1068 = vpack.c.bf16 %v1051, %v1048
    %v1069 = vpack.c.bf16 %v1059, %v1056
    %v1078 = vunpack.c.l.b16 %v1062
    %v1079 = vunpack.c.h.b16 %v1062
    %v1080 = vunpack.c.l.b16 %v1063
    %v1081 = vunpack.c.h.b16 %v1063
    %v1082 = vunpack.c.l.b16 %v1064
    %v1083 = vunpack.c.h.b16 %v1064
    %v1084 = vunpack.c.l.b16 %v1065
    %v1085 = vunpack.c.h.b16 %v1065
    %v1086 = vunpack.c.l.b16 %v1066
    %v1087 = vunpack.c.h.b16 %v1066
    %v1088 = vunpack.c.l.b16 %v1067
    %v1089 = vunpack.c.h.b16 %v1067
    %v1090 = vunpack.c.l.b16 %v1068
    %v1091 = vunpack.c.h.b16 %v1068
    %v1092 = vunpack.c.l.b16 %v1069
    %v1093 = vunpack.c.h.b16 %v1069
    %v1094 = vpack.c.b16 %v1078, %v1078
    %v1095 = vpack.c.b16 %v1079, %v1079
    %v1096 = vpack.c.b16 %v1080, %v1080
    %v1097 = vpack.c.b16 %v1081, %v1081
    %v1098 = vpack.c.b16 %v1082, %v1082
    %v1099 = vpack.c.b16 %v1083, %v1083
    %v1100 = vpack.c.b16 %v1084, %v1084
    %v1101 = vpack.c.b16 %v1085, %v1085
    %v1102 = vpack.c.b16 %v1086, %v1086
    %v1103 = vpack.c.b16 %v1087, %v1087
    %v1104 = vpack.c.b16 %v1088, %v1088
    %v1105 = vpack.c.b16 %v1089, %v1089
    %v1106 = vpack.c.b16 %v1090, %v1090
    %v1107 = vpack.c.b16 %v1091, %v1091
    %v1108 = vpack.c.b16 %v1092, %v1092
    %v1109 = vpack.c.b16 %v1093, %v1093
    %s1126 = scalar_lea.vmem %s6, 128
    %1127 = vst.msk [vmem:[%s1126] sm:$0xf] %vm674, %v1094
    %1128 = vst.msk [vmem:[%s1126 + $0x4] sm:$0xf] %vm674, %v1095
    %1129 = vst.msk [vmem:[%s1126 + $0x8] sm:$0xf] %vm674, %v1096
    %1130 = vst.msk [vmem:[%s1126 + $0xc] sm:$0xf] %vm674, %v1097
    %1131 = vst.msk [vmem:[%s1126 + $0x10] sm:$0xf] %vm674, %v1098
    %1132 = vst.msk [vmem:[%s1126 + $0x14] sm:$0xf] %vm674, %v1099
    %1133 = vst.msk [vmem:[%s1126 + $0x18] sm:$0xf] %vm674, %v1100
    %1134 = vst.msk [vmem:[%s1126 + $0x1c] sm:$0xf] %vm674, %v1101
    %1135 = vst.msk [vmem:[%s1126 + $0x20] sm:$0xf] %vm674, %v1102
    %1136 = vst.msk [vmem:[%s1126 + $0x24] sm:$0xf] %vm674, %v1103
    %1137 = vst.msk [vmem:[%s1126 + $0x28] sm:$0xf] %vm674, %v1104
    %1138 = vst.msk [vmem:[%s1126 + $0x2c] sm:$0xf] %vm674, %v1105
    %1139 = vst.msk [vmem:[%s1126 + $0x30] sm:$0xf] %vm674, %v1106
    %1140 = vst.msk [vmem:[%s1126 + $0x34] sm:$0xf] %vm674, %v1107
    %1141 = vst.msk [vmem:[%s1126 + $0x38] sm:$0xf] %vm674, %v1108
    %1142 = vst.msk [vmem:[%s1126 + $0x3c] sm:$0xf] %vm674, %v1109
    %v1143 = vld [vmem:[%s3 + $0xc] sm:$0xf]
    %1144 = vrot.lane.b32.xlu0 %v216, 104
    %v1145 = vpop.permute.xlu0 %1144
    %1146 = vrot.lane.b32.xlu0 %v217, 104
    %v1147 = vpop.permute.xlu0 %1146
    %1148 = vrot.lane.b32.xlu0 %v218, 104
    %v1149 = vpop.permute.xlu0 %1148
    %1150 = vrot.lane.b32.xlu0 %v219, 104
    %v1151 = vpop.permute.xlu0 %1150
    %1152 = vrot.lane.b32.xlu0 %v220, 104
    %v1153 = vpop.permute.xlu0 %1152
    %1154 = vrot.lane.b32.xlu0 %v221, 104
    %v1155 = vpop.permute.xlu0 %1154
    %1156 = vrot.lane.b32.xlu0 %v222, 104
    %v1157 = vpop.permute.xlu0 %1156
    %1158 = vrot.lane.b32.xlu0 %v223, 104
    %v1159 = vpop.permute.xlu0 %1158
    %v1161 = vsel %vm378, %v1145, 0
    %v1164 = vsel %vm378, %v1147, 0
    %v1167 = vsel %vm378, %v1149, 0
    %v1170 = vsel %vm378, %v1151, 0
    %v1173 = vsel %vm378, %v1153, 0
    %v1176 = vsel %vm378, %v1155, 0
    %v1179 = vsel %vm378, %v1157, 0
    %v1182 = vsel %vm378, %v1159, 0
    %v1185 = vsel %vm509, %v1143, 0
    %1187 = vmatprep.subr.bf16.mxu0 0
    %1188 = vmatpush1.bf16.msra.mxu0 0
    %1189 = vmatprep.subr.bf16.mxu0 0
    %1190 = vmatpush1.bf16.msra.mxu0 0
    %1191 = vmatprep.subr.bf16.mxu0 0
    %1192 = vmatpush1.bf16.msra.mxu0 0
    %1193 = vmatprep.subr.bf16.mxu0 0
    %1194 = vmatpush1.bf16.msra.mxu0 0
    %1195 = vmatprep.subr.bf16.mxu0 0
    %1196 = vmatpush1.bf16.msra.mxu0 0
    %1197 = vmatprep.subr.bf16.mxu0 0
    %1198 = vmatpush1.bf16.msra.mxu0 0
    %1199 = vmatprep.subr.bf16.mxu0 0
    %1200 = vmatpush1.bf16.msra.mxu0 0
    %1201 = vmatprep.subr.bf16.mxu0 0
    %1202 = vmatpush1.bf16.msra.mxu0 %v1185
    %1203 = vmatprep.subr.bf16.mxu0 0
    %1204 = vmatpush2.bf16.msra.mxu0 0
    %1205 = vmatprep.subr.bf16.mxu0 0
    %1206 = vmatpush2.bf16.msra.mxu0 0
    %1207 = vmatprep.subr.bf16.mxu0 0
    %1208 = vmatpush2.bf16.msra.mxu0 0
    %1209 = vmatprep.subr.bf16.mxu0 0
    %1210 = vmatpush2.bf16.msra.mxu0 0
    %1211 = vmatprep.subr.bf16.mxu0 0
    %1212 = vmatpush2.bf16.msra.mxu0 0
    %1213 = vmatprep.subr.bf16.mxu0 0
    %1214 = vmatpush2.bf16.msra.mxu0 0
    %1215 = vmatprep.subr.bf16.mxu0 0
    %1216 = vmatpush2.bf16.msra.mxu0 0
    %1217 = vmatprep.subr.bf16.mxu0 0
    %1218 = vmatpush2.bf16.msra.mxu0 0
    %1219 = vmatprep.mubr.bf16.mxu0 0
    %1220 = vmatmul.mubr.bf16.gmra.mxu0 %v1161
    %v1221 = vpop.f32.mrf.mxu0
    %v1222 = vadd.f32 0.0, %v1221
    %v1223 = vpop.f32.mrf.mxu0
    %v1224 = vpop.f32.mrf.mxu0
    %v1225 = vadd.f32 0.0, %v1224
    %v1226 = vpop.f32.mrf.mxu0
    %1227 = vmatprep.mubr.bf16.mxu0 0
    %1228 = vmatmul.mubr.bf16.gmra.mxu0 %v1164
    %v1229 = vpop.f32.mrf.mxu0
    %v1230 = vadd.f32 0.0, %v1229
    %v1231 = vpop.f32.mrf.mxu0
    %v1232 = vpop.f32.mrf.mxu0
    %v1233 = vadd.f32 0.0, %v1232
    %v1234 = vpop.f32.mrf.mxu0
    %1235 = vmatprep.mubr.bf16.mxu0 0
    %1236 = vmatmul.mubr.bf16.gmra.mxu0 %v1167
    %v1237 = vpop.f32.mrf.mxu0
    %v1238 = vadd.f32 0.0, %v1237
    %v1239 = vpop.f32.mrf.mxu0
    %v1240 = vpop.f32.mrf.mxu0
    %v1241 = vadd.f32 0.0, %v1240
    %v1242 = vpop.f32.mrf.mxu0
    %1243 = vmatprep.mubr.bf16.mxu0 0
    %1244 = vmatmul.mubr.bf16.gmra.mxu0 %v1170
    %v1245 = vpop.f32.mrf.mxu0
    %v1246 = vadd.f32 0.0, %v1245
    %v1247 = vpop.f32.mrf.mxu0
    %v1248 = vpop.f32.mrf.mxu0
    %v1249 = vadd.f32 0.0, %v1248
    %v1250 = vpop.f32.mrf.mxu0
    %1251 = vmatprep.mubr.bf16.mxu0 0
    %1252 = vmatmul.mubr.bf16.gmra.mxu0 %v1173
    %v1253 = vpop.f32.mrf.mxu0
    %v1254 = vadd.f32 0.0, %v1253
    %v1255 = vpop.f32.mrf.mxu0
    %v1256 = vpop.f32.mrf.mxu0
    %v1257 = vadd.f32 0.0, %v1256
    %v1258 = vpop.f32.mrf.mxu0
    %1259 = vmatprep.mubr.bf16.mxu0 0
    %1260 = vmatmul.mubr.bf16.gmra.mxu0 %v1176
    %v1261 = vpop.f32.mrf.mxu0
    %v1262 = vadd.f32 0.0, %v1261
    %v1263 = vpop.f32.mrf.mxu0
    %v1264 = vpop.f32.mrf.mxu0
    %v1265 = vadd.f32 0.0, %v1264
    %v1266 = vpop.f32.mrf.mxu0
    %1267 = vmatprep.mubr.bf16.mxu0 0
    %1268 = vmatmul.mubr.bf16.gmra.mxu0 %v1179
    %v1269 = vpop.f32.mrf.mxu0
    %v1270 = vadd.f32 0.0, %v1269
    %v1271 = vpop.f32.mrf.mxu0
    %v1272 = vpop.f32.mrf.mxu0
    %v1273 = vadd.f32 0.0, %v1272
    %v1274 = vpop.f32.mrf.mxu0
    %1275 = vmatprep.mubr.bf16.mxu0 0
    %1276 = vmatmul.mubr.bf16.gmra.mxu0 %v1182
    %v1277 = vpop.f32.mrf.mxu0
    %v1278 = vadd.f32 0.0, %v1277
    %v1279 = vpop.f32.mrf.mxu0
    %v1280 = vpop.f32.mrf.mxu0
    %v1281 = vadd.f32 0.0, %v1280
    %v1282 = vpop.f32.mrf.mxu0
    %1283 = vdwg.mxu0
    %v1284 = vpack.c.bf16 %v1225, %v1222
    %v1285 = vpack.c.bf16 %v1233, %v1230
    %v1286 = vpack.c.bf16 %v1241, %v1238
    %v1287 = vpack.c.bf16 %v1249, %v1246
    %v1288 = vpack.c.bf16 %v1257, %v1254
    %v1289 = vpack.c.bf16 %v1265, %v1262
    %v1290 = vpack.c.bf16 %v1273, %v1270
    %v1291 = vpack.c.bf16 %v1281, %v1278
    %v1300 = vunpack.c.l.b16 %v1284
    %v1301 = vunpack.c.h.b16 %v1284
    %v1302 = vunpack.c.l.b16 %v1285
    %v1303 = vunpack.c.h.b16 %v1285
    %v1304 = vunpack.c.l.b16 %v1286
    %v1305 = vunpack.c.h.b16 %v1286
    %v1306 = vunpack.c.l.b16 %v1287
    %v1307 = vunpack.c.h.b16 %v1287
    %v1308 = vunpack.c.l.b16 %v1288
    %v1309 = vunpack.c.h.b16 %v1288
    %v1310 = vunpack.c.l.b16 %v1289
    %v1311 = vunpack.c.h.b16 %v1289
    %v1312 = vunpack.c.l.b16 %v1290
    %v1313 = vunpack.c.h.b16 %v1290
    %v1314 = vunpack.c.l.b16 %v1291
    %v1315 = vunpack.c.h.b16 %v1291
    %v1316 = vpack.c.b16 %v1300, %v1300
    %v1317 = vpack.c.b16 %v1301, %v1301
    %v1318 = vpack.c.b16 %v1302, %v1302
    %v1319 = vpack.c.b16 %v1303, %v1303
    %v1320 = vpack.c.b16 %v1304, %v1304
    %v1321 = vpack.c.b16 %v1305, %v1305
    %v1322 = vpack.c.b16 %v1306, %v1306
    %v1323 = vpack.c.b16 %v1307, %v1307
    %v1324 = vpack.c.b16 %v1308, %v1308
    %v1325 = vpack.c.b16 %v1309, %v1309
    %v1326 = vpack.c.b16 %v1310, %v1310
    %v1327 = vpack.c.b16 %v1311, %v1311
    %v1328 = vpack.c.b16 %v1312, %v1312
    %v1329 = vpack.c.b16 %v1313, %v1313
    %v1330 = vpack.c.b16 %v1314, %v1314
    %v1331 = vpack.c.b16 %v1315, %v1315
    %s1348 = scalar_lea.vmem %s6, 192
    %1349 = vst.msk [vmem:[%s1348] sm:$0xf] %vm674, %v1316
    %1350 = vst.msk [vmem:[%s1348 + $0x4] sm:$0xf] %vm674, %v1317
    %1351 = vst.msk [vmem:[%s1348 + $0x8] sm:$0xf] %vm674, %v1318
    %1352 = vst.msk [vmem:[%s1348 + $0xc] sm:$0xf] %vm674, %v1319
    %1353 = vst.msk [vmem:[%s1348 + $0x10] sm:$0xf] %vm674, %v1320
    %1354 = vst.msk [vmem:[%s1348 + $0x14] sm:$0xf] %vm674, %v1321
    %1355 = vst.msk [vmem:[%s1348 + $0x18] sm:$0xf] %vm674, %v1322
    %1356 = vst.msk [vmem:[%s1348 + $0x1c] sm:$0xf] %vm674, %v1323
    %1357 = vst.msk [vmem:[%s1348 + $0x20] sm:$0xf] %vm674, %v1324
    %1358 = vst.msk [vmem:[%s1348 + $0x24] sm:$0xf] %vm674, %v1325
    %1359 = vst.msk [vmem:[%s1348 + $0x28] sm:$0xf] %vm674, %v1326
    %1360 = vst.msk [vmem:[%s1348 + $0x2c] sm:$0xf] %vm674, %v1327
    %1361 = vst.msk [vmem:[%s1348 + $0x30] sm:$0xf] %vm674, %v1328
    %1362 = vst.msk [vmem:[%s1348 + $0x34] sm:$0xf] %vm674, %v1329
    %1363 = vst.msk [vmem:[%s1348 + $0x38] sm:$0xf] %vm674, %v1330
    %1364 = vst.msk [vmem:[%s1348 + $0x3c] sm:$0xf] %vm674, %v1331
    %v1365 = vld [vmem:[%s3 + $0x10] sm:$0xf]
    %1366 = vrot.lane.b32.xlu0 %v216, 96
    %v1367 = vpop.permute.xlu0 %1366
    %1368 = vrot.lane.b32.xlu0 %v217, 96
    %v1369 = vpop.permute.xlu0 %1368
    %1370 = vrot.lane.b32.xlu0 %v218, 96
    %v1371 = vpop.permute.xlu0 %1370
    %1372 = vrot.lane.b32.xlu0 %v219, 96
    %v1373 = vpop.permute.xlu0 %1372
    %1374 = vrot.lane.b32.xlu0 %v220, 96
    %v1375 = vpop.permute.xlu0 %1374
    %1376 = vrot.lane.b32.xlu0 %v221, 96
    %v1377 = vpop.permute.xlu0 %1376
    %1378 = vrot.lane.b32.xlu0 %v222, 96
    %v1379 = vpop.permute.xlu0 %1378
    %1380 = vrot.lane.b32.xlu0 %v223, 96
    %v1381 = vpop.permute.xlu0 %1380
    %v1383 = vsel %vm378, %v1367, 0
    %v1386 = vsel %vm378, %v1369, 0
    %v1389 = vsel %vm378, %v1371, 0
    %v1392 = vsel %vm378, %v1373, 0
    %v1395 = vsel %vm378, %v1375, 0
    %v1398 = vsel %vm378, %v1377, 0
    %v1401 = vsel %vm378, %v1379, 0
    %v1404 = vsel %vm378, %v1381, 0
    %v1407 = vsel %vm509, %v1365, 0
    %1409 = vmatprep.subr.bf16.mxu0 0
    %1410 = vmatpush1.bf16.msra.mxu0 0
    %1411 = vmatprep.subr.bf16.mxu0 0
    %1412 = vmatpush1.bf16.msra.mxu0 0
    %1413 = vmatprep.subr.bf16.mxu0 0
    %1414 = vmatpush1.bf16.msra.mxu0 0
    %1415 = vmatprep.subr.bf16.mxu0 0
    %1416 = vmatpush1.bf16.msra.mxu0 0
    %1417 = vmatprep.subr.bf16.mxu0 0
    %1418 = vmatpush1.bf16.msra.mxu0 0
    %1419 = vmatprep.subr.bf16.mxu0 0
    %1420 = vmatpush1.bf16.msra.mxu0 0
    %1421 = vmatprep.subr.bf16.mxu0 0
    %1422 = vmatpush1.bf16.msra.mxu0 0
    %1423 = vmatprep.subr.bf16.mxu0 0
    %1424 = vmatpush1.bf16.msra.mxu0 %v1407
    %1425 = vmatprep.subr.bf16.mxu0 0
    %1426 = vmatpush2.bf16.msra.mxu0 0
    %1427 = vmatprep.subr.bf16.mxu0 0
    %1428 = vmatpush2.bf16.msra.mxu0 0
    %1429 = vmatprep.subr.bf16.mxu0 0
    %1430 = vmatpush2.bf16.msra.mxu0 0
    %1431 = vmatprep.subr.bf16.mxu0 0
    %1432 = vmatpush2.bf16.msra.mxu0 0
    %1433 = vmatprep.subr.bf16.mxu0 0
    %1434 = vmatpush2.bf16.msra.mxu0 0
    %1435 = vmatprep.subr.bf16.mxu0 0
    %1436 = vmatpush2.bf16.msra.mxu0 0
    %1437 = vmatprep.subr.bf16.mxu0 0
    %1438 = vmatpush2.bf16.msra.mxu0 0
    %1439 = vmatprep.subr.bf16.mxu0 0
    %1440 = vmatpush2.bf16.msra.mxu0 0
    %1441 = vmatprep.mubr.bf16.mxu0 0
    %1442 = vmatmul.mubr.bf16.gmra.mxu0 %v1383
    %v1443 = vpop.f32.mrf.mxu0
    %v1444 = vadd.f32 0.0, %v1443
    %v1445 = vpop.f32.mrf.mxu0
    %v1446 = vpop.f32.mrf.mxu0
    %v1447 = vadd.f32 0.0, %v1446
    %v1448 = vpop.f32.mrf.mxu0
    %1449 = vmatprep.mubr.bf16.mxu0 0
    %1450 = vmatmul.mubr.bf16.gmra.mxu0 %v1386
    %v1451 = vpop.f32.mrf.mxu0
    %v1452 = vadd.f32 0.0, %v1451
    %v1453 = vpop.f32.mrf.mxu0
    %v1454 = vpop.f32.mrf.mxu0
    %v1455 = vadd.f32 0.0, %v1454
    %v1456 = vpop.f32.mrf.mxu0
    %1457 = vmatprep.mubr.bf16.mxu0 0
    %1458 = vmatmul.mubr.bf16.gmra.mxu0 %v1389
    %v1459 = vpop.f32.mrf.mxu0
    %v1460 = vadd.f32 0.0, %v1459
    %v1461 = vpop.f32.mrf.mxu0
    %v1462 = vpop.f32.mrf.mxu0
    %v1463 = vadd.f32 0.0, %v1462
    %v1464 = vpop.f32.mrf.mxu0
    %1465 = vmatprep.mubr.bf16.mxu0 0
    %1466 = vmatmul.mubr.bf16.gmra.mxu0 %v1392
    %v1467 = vpop.f32.mrf.mxu0
    %v1468 = vadd.f32 0.0, %v1467
    %v1469 = vpop.f32.mrf.mxu0
    %v1470 = vpop.f32.mrf.mxu0
    %v1471 = vadd.f32 0.0, %v1470
    %v1472 = vpop.f32.mrf.mxu0
    %1473 = vmatprep.mubr.bf16.mxu0 0
    %1474 = vmatmul.mubr.bf16.gmra.mxu0 %v1395
    %v1475 = vpop.f32.mrf.mxu0
    %v1476 = vadd.f32 0.0, %v1475
    %v1477 = vpop.f32.mrf.mxu0
    %v1478 = vpop.f32.mrf.mxu0
    %v1479 = vadd.f32 0.0, %v1478
    %v1480 = vpop.f32.mrf.mxu0
    %1481 = vmatprep.mubr.bf16.mxu0 0
    %1482 = vmatmul.mubr.bf16.gmra.mxu0 %v1398
    %v1483 = vpop.f32.mrf.mxu0
    %v1484 = vadd.f32 0.0, %v1483
    %v1485 = vpop.f32.mrf.mxu0
    %v1486 = vpop.f32.mrf.mxu0
    %v1487 = vadd.f32 0.0, %v1486
    %v1488 = vpop.f32.mrf.mxu0
    %1489 = vmatprep.mubr.bf16.mxu0 0
    %1490 = vmatmul.mubr.bf16.gmra.mxu0 %v1401
    %v1491 = vpop.f32.mrf.mxu0
    %v1492 = vadd.f32 0.0, %v1491
    %v1493 = vpop.f32.mrf.mxu0
    %v1494 = vpop.f32.mrf.mxu0
    %v1495 = vadd.f32 0.0, %v1494
    %v1496 = vpop.f32.mrf.mxu0
    %1497 = vmatprep.mubr.bf16.mxu0 0
    %1498 = vmatmul.mubr.bf16.gmra.mxu0 %v1404
    %v1499 = vpop.f32.mrf.mxu0
    %v1500 = vadd.f32 0.0, %v1499
    %v1501 = vpop.f32.mrf.mxu0
    %v1502 = vpop.f32.mrf.mxu0
    %v1503 = vadd.f32 0.0, %v1502
    %v1504 = vpop.f32.mrf.mxu0
    %1505 = vdwg.mxu0
    %v1506 = vpack.c.bf16 %v1447, %v1444
    %v1507 = vpack.c.bf16 %v1455, %v1452
    %v1508 = vpack.c.bf16 %v1463, %v1460
    %v1509 = vpack.c.bf16 %v1471, %v1468
    %v1510 = vpack.c.bf16 %v1479, %v1476
    %v1511 = vpack.c.bf16 %v1487, %v1484
    %v1512 = vpack.c.bf16 %v1495, %v1492
    %v1513 = vpack.c.bf16 %v1503, %v1500
    %v1522 = vunpack.c.l.b16 %v1506
    %v1523 = vunpack.c.h.b16 %v1506
    %v1524 = vunpack.c.l.b16 %v1507
    %v1525 = vunpack.c.h.b16 %v1507
    %v1526 = vunpack.c.l.b16 %v1508
    %v1527 = vunpack.c.h.b16 %v1508
    %v1528 = vunpack.c.l.b16 %v1509
    %v1529 = vunpack.c.h.b16 %v1509
    %v1530 = vunpack.c.l.b16 %v1510
    %v1531 = vunpack.c.h.b16 %v1510
    %v1532 = vunpack.c.l.b16 %v1511
    %v1533 = vunpack.c.h.b16 %v1511
    %v1534 = vunpack.c.l.b16 %v1512
    %v1535 = vunpack.c.h.b16 %v1512
    %v1536 = vunpack.c.l.b16 %v1513
    %v1537 = vunpack.c.h.b16 %v1513
    %v1538 = vpack.c.b16 %v1522, %v1522
    %v1539 = vpack.c.b16 %v1523, %v1523
    %v1540 = vpack.c.b16 %v1524, %v1524
    %v1541 = vpack.c.b16 %v1525, %v1525
    %v1542 = vpack.c.b16 %v1526, %v1526
    %v1543 = vpack.c.b16 %v1527, %v1527
    %v1544 = vpack.c.b16 %v1528, %v1528
    %v1545 = vpack.c.b16 %v1529, %v1529
    %v1546 = vpack.c.b16 %v1530, %v1530
    %v1547 = vpack.c.b16 %v1531, %v1531
    %v1548 = vpack.c.b16 %v1532, %v1532
    %v1549 = vpack.c.b16 %v1533, %v1533
    %v1550 = vpack.c.b16 %v1534, %v1534
    %v1551 = vpack.c.b16 %v1535, %v1535
    %v1552 = vpack.c.b16 %v1536, %v1536
    %v1553 = vpack.c.b16 %v1537, %v1537
    %s1570 = scalar_lea.vmem %s6, 256
    %1571 = vst.msk [vmem:[%s1570] sm:$0xf] %vm674, %v1538
    %1572 = vst.msk [vmem:[%s1570 + $0x4] sm:$0xf] %vm674, %v1539
    %1573 = vst.msk [vmem:[%s1570 + $0x8] sm:$0xf] %vm674, %v1540
    %1574 = vst.msk [vmem:[%s1570 + $0xc] sm:$0xf] %vm674, %v1541
    %1575 = vst.msk [vmem:[%s1570 + $0x10] sm:$0xf] %vm674, %v1542
    %1576 = vst.msk [vmem:[%s1570 + $0x14] sm:$0xf] %vm674, %v1543
    %1577 = vst.msk [vmem:[%s1570 + $0x18] sm:$0xf] %vm674, %v1544
    %1578 = vst.msk [vmem:[%s1570 + $0x1c] sm:$0xf] %vm674, %v1545
    %1579 = vst.msk [vmem:[%s1570 + $0x20] sm:$0xf] %vm674, %v1546
    %1580 = vst.msk [vmem:[%s1570 + $0x24] sm:$0xf] %vm674, %v1547
    %1581 = vst.msk [vmem:[%s1570 + $0x28] sm:$0xf] %vm674, %v1548
    %1582 = vst.msk [vmem:[%s1570 + $0x2c] sm:$0xf] %vm674, %v1549
    %1583 = vst.msk [vmem:[%s1570 + $0x30] sm:$0xf] %vm674, %v1550
    %1584 = vst.msk [vmem:[%s1570 + $0x34] sm:$0xf] %vm674, %v1551
    %1585 = vst.msk [vmem:[%s1570 + $0x38] sm:$0xf] %vm674, %v1552
    %1586 = vst.msk [vmem:[%s1570 + $0x3c] sm:$0xf] %vm674, %v1553
    %v1587 = vld [vmem:[%s3 + $0x14] sm:$0xf]
    %1588 = vrot.lane.b32.xlu0 %v216, 88
    %v1589 = vpop.permute.xlu0 %1588
    %1590 = vrot.lane.b32.xlu0 %v217, 88
    %v1591 = vpop.permute.xlu0 %1590
    %1592 = vrot.lane.b32.xlu0 %v218, 88
    %v1593 = vpop.permute.xlu0 %1592
    %1594 = vrot.lane.b32.xlu0 %v219, 88
    %v1595 = vpop.permute.xlu0 %1594
    %1596 = vrot.lane.b32.xlu0 %v220, 88
    %v1597 = vpop.permute.xlu0 %1596
    %1598 = vrot.lane.b32.xlu0 %v221, 88
    %v1599 = vpop.permute.xlu0 %1598
    %1600 = vrot.lane.b32.xlu0 %v222, 88
    %v1601 = vpop.permute.xlu0 %1600
    %1602 = vrot.lane.b32.xlu0 %v223, 88
    %v1603 = vpop.permute.xlu0 %1602
    %v1605 = vsel %vm378, %v1589, 0
    %v1608 = vsel %vm378, %v1591, 0
    %v1611 = vsel %vm378, %v1593, 0
    %v1614 = vsel %vm378, %v1595, 0
    %v1617 = vsel %vm378, %v1597, 0
    %v1620 = vsel %vm378, %v1599, 0
    %v1623 = vsel %vm378, %v1601, 0
    %v1626 = vsel %vm378, %v1603, 0
    %v1629 = vsel %vm509, %v1587, 0
    %1631 = vmatprep.subr.bf16.mxu0 0
    %1632 = vmatpush1.bf16.msra.mxu0 0
    %1633 = vmatprep.subr.bf16.mxu0 0
    %1634 = vmatpush1.bf16.msra.mxu0 0
    %1635 = vmatprep.subr.bf16.mxu0 0
    %1636 = vmatpush1.bf16.msra.mxu0 0
    %1637 = vmatprep.subr.bf16.mxu0 0
    %1638 = vmatpush1.bf16.msra.mxu0 0
    %1639 = vmatprep.subr.bf16.mxu0 0
    %1640 = vmatpush1.bf16.msra.mxu0 0
    %1641 = vmatprep.subr.bf16.mxu0 0
    %1642 = vmatpush1.bf16.msra.mxu0 0
    %1643 = vmatprep.subr.bf16.mxu0 0
    %1644 = vmatpush1.bf16.msra.mxu0 0
    %1645 = vmatprep.subr.bf16.mxu0 0
    %1646 = vmatpush1.bf16.msra.mxu0 %v1629
    %1647 = vmatprep.subr.bf16.mxu0 0
    %1648 = vmatpush2.bf16.msra.mxu0 0
    %1649 = vmatprep.subr.bf16.mxu0 0
    %1650 = vmatpush2.bf16.msra.mxu0 0
    %1651 = vmatprep.subr.bf16.mxu0 0
    %1652 = vmatpush2.bf16.msra.mxu0 0
    %1653 = vmatprep.subr.bf16.mxu0 0
    %1654 = vmatpush2.bf16.msra.mxu0 0
    %1655 = vmatprep.subr.bf16.mxu0 0
    %1656 = vmatpush2.bf16.msra.mxu0 0
    %1657 = vmatprep.subr.bf16.mxu0 0
    %1658 = vmatpush2.bf16.msra.mxu0 0
    %1659 = vmatprep.subr.bf16.mxu0 0
    %1660 = vmatpush2.bf16.msra.mxu0 0
    %1661 = vmatprep.subr.bf16.mxu0 0
    %1662 = vmatpush2.bf16.msra.mxu0 0
    %1663 = vmatprep.mubr.bf16.mxu0 0
    %1664 = vmatmul.mubr.bf16.gmra.mxu0 %v1605
    %v1665 = vpop.f32.mrf.mxu0
    %v1666 = vadd.f32 0.0, %v1665
    %v1667 = vpop.f32.mrf.mxu0
    %v1668 = vpop.f32.mrf.mxu0
    %v1669 = vadd.f32 0.0, %v1668
    %v1670 = vpop.f32.mrf.mxu0
    %1671 = vmatprep.mubr.bf16.mxu0 0
    %1672 = vmatmul.mubr.bf16.gmra.mxu0 %v1608
    %v1673 = vpop.f32.mrf.mxu0
    %v1674 = vadd.f32 0.0, %v1673
    %v1675 = vpop.f32.mrf.mxu0
    %v1676 = vpop.f32.mrf.mxu0
    %v1677 = vadd.f32 0.0, %v1676
    %v1678 = vpop.f32.mrf.mxu0
    %1679 = vmatprep.mubr.bf16.mxu0 0
    %1680 = vmatmul.mubr.bf16.gmra.mxu0 %v1611
    %v1681 = vpop.f32.mrf.mxu0
    %v1682 = vadd.f32 0.0, %v1681
    %v1683 = vpop.f32.mrf.mxu0
    %v1684 = vpop.f32.mrf.mxu0
    %v1685 = vadd.f32 0.0, %v1684
    %v1686 = vpop.f32.mrf.mxu0
    %1687 = vmatprep.mubr.bf16.mxu0 0
    %1688 = vmatmul.mubr.bf16.gmra.mxu0 %v1614
    %v1689 = vpop.f32.mrf.mxu0
    %v1690 = vadd.f32 0.0, %v1689
    %v1691 = vpop.f32.mrf.mxu0
    %v1692 = vpop.f32.mrf.mxu0
    %v1693 = vadd.f32 0.0, %v1692
    %v1694 = vpop.f32.mrf.mxu0
    %1695 = vmatprep.mubr.bf16.mxu0 0
    %1696 = vmatmul.mubr.bf16.gmra.mxu0 %v1617
    %v1697 = vpop.f32.mrf.mxu0
    %v1698 = vadd.f32 0.0, %v1697
    %v1699 = vpop.f32.mrf.mxu0
    %v1700 = vpop.f32.mrf.mxu0
    %v1701 = vadd.f32 0.0, %v1700
    %v1702 = vpop.f32.mrf.mxu0
    %1703 = vmatprep.mubr.bf16.mxu0 0
    %1704 = vmatmul.mubr.bf16.gmra.mxu0 %v1620
    %v1705 = vpop.f32.mrf.mxu0
    %v1706 = vadd.f32 0.0, %v1705
    %v1707 = vpop.f32.mrf.mxu0
    %v1708 = vpop.f32.mrf.mxu0
    %v1709 = vadd.f32 0.0, %v1708
    %v1710 = vpop.f32.mrf.mxu0
    %1711 = vmatprep.mubr.bf16.mxu0 0
    %1712 = vmatmul.mubr.bf16.gmra.mxu0 %v1623
    %v1713 = vpop.f32.mrf.mxu0
    %v1714 = vadd.f32 0.0, %v1713
    %v1715 = vpop.f32.mrf.mxu0
    %v1716 = vpop.f32.mrf.mxu0
    %v1717 = vadd.f32 0.0, %v1716
    %v1718 = vpop.f32.mrf.mxu0
    %1719 = vmatprep.mubr.bf16.mxu0 0
    %1720 = vmatmul.mubr.bf16.gmra.mxu0 %v1626
    %v1721 = vpop.f32.mrf.mxu0
    %v1722 = vadd.f32 0.0, %v1721
    %v1723 = vpop.f32.mrf.mxu0
    %v1724 = vpop.f32.mrf.mxu0
    %v1725 = vadd.f32 0.0, %v1724
    %v1726 = vpop.f32.mrf.mxu0
    %1727 = vdwg.mxu0
    %v1728 = vpack.c.bf16 %v1669, %v1666
    %v1729 = vpack.c.bf16 %v1677, %v1674
    %v1730 = vpack.c.bf16 %v1685, %v1682
    %v1731 = vpack.c.bf16 %v1693, %v1690
    %v1732 = vpack.c.bf16 %v1701, %v1698
    %v1733 = vpack.c.bf16 %v1709, %v1706
    %v1734 = vpack.c.bf16 %v1717, %v1714
    %v1735 = vpack.c.bf16 %v1725, %v1722
    %v1744 = vunpack.c.l.b16 %v1728
    %v1745 = vunpack.c.h.b16 %v1728
    %v1746 = vunpack.c.l.b16 %v1729
    %v1747 = vunpack.c.h.b16 %v1729
    %v1748 = vunpack.c.l.b16 %v1730
    %v1749 = vunpack.c.h.b16 %v1730
    %v1750 = vunpack.c.l.b16 %v1731
    %v1751 = vunpack.c.h.b16 %v1731
    %v1752 = vunpack.c.l.b16 %v1732
    %v1753 = vunpack.c.h.b16 %v1732
    %v1754 = vunpack.c.l.b16 %v1733
    %v1755 = vunpack.c.h.b16 %v1733
    %v1756 = vunpack.c.l.b16 %v1734
    %v1757 = vunpack.c.h.b16 %v1734
    %v1758 = vunpack.c.l.b16 %v1735
    %v1759 = vunpack.c.h.b16 %v1735
    %v1760 = vpack.c.b16 %v1744, %v1744
    %v1761 = vpack.c.b16 %v1745, %v1745
    %v1762 = vpack.c.b16 %v1746, %v1746
    %v1763 = vpack.c.b16 %v1747, %v1747
    %v1764 = vpack.c.b16 %v1748, %v1748
    %v1765 = vpack.c.b16 %v1749, %v1749
    %v1766 = vpack.c.b16 %v1750, %v1750
    %v1767 = vpack.c.b16 %v1751, %v1751
    %v1768 = vpack.c.b16 %v1752, %v1752
    %v1769 = vpack.c.b16 %v1753, %v1753
    %v1770 = vpack.c.b16 %v1754, %v1754
    %v1771 = vpack.c.b16 %v1755, %v1755
    %v1772 = vpack.c.b16 %v1756, %v1756
    %v1773 = vpack.c.b16 %v1757, %v1757
    %v1774 = vpack.c.b16 %v1758, %v1758
    %v1775 = vpack.c.b16 %v1759, %v1759
    %s1792 = scalar_lea.vmem %s6, 320
    %1793 = vst.msk [vmem:[%s1792] sm:$0xf] %vm674, %v1760
    %1794 = vst.msk [vmem:[%s1792 + $0x4] sm:$0xf] %vm674, %v1761
    %1795 = vst.msk [vmem:[%s1792 + $0x8] sm:$0xf] %vm674, %v1762
    %1796 = vst.msk [vmem:[%s1792 + $0xc] sm:$0xf] %vm674, %v1763
    %1797 = vst.msk [vmem:[%s1792 + $0x10] sm:$0xf] %vm674, %v1764
    %1798 = vst.msk [vmem:[%s1792 + $0x14] sm:$0xf] %vm674, %v1765
    %1799 = vst.msk [vmem:[%s1792 + $0x18] sm:$0xf] %vm674, %v1766
    %1800 = vst.msk [vmem:[%s1792 + $0x1c] sm:$0xf] %vm674, %v1767
    %1801 = vst.msk [vmem:[%s1792 + $0x20] sm:$0xf] %vm674, %v1768
    %1802 = vst.msk [vmem:[%s1792 + $0x24] sm:$0xf] %vm674, %v1769
    %1803 = vst.msk [vmem:[%s1792 + $0x28] sm:$0xf] %vm674, %v1770
    %1804 = vst.msk [vmem:[%s1792 + $0x2c] sm:$0xf] %vm674, %v1771
    %1805 = vst.msk [vmem:[%s1792 + $0x30] sm:$0xf] %vm674, %v1772
    %1806 = vst.msk [vmem:[%s1792 + $0x34] sm:$0xf] %vm674, %v1773
    %1807 = vst.msk [vmem:[%s1792 + $0x38] sm:$0xf] %vm674, %v1774
    %1808 = vst.msk [vmem:[%s1792 + $0x3c] sm:$0xf] %vm674, %v1775
    %v1809 = vld [vmem:[%s3 + $0x18] sm:$0xf]
    %1810 = vrot.lane.b32.xlu0 %v216, 80
    %v1811 = vpop.permute.xlu0 %1810
    %1812 = vrot.lane.b32.xlu0 %v217, 80
    %v1813 = vpop.permute.xlu0 %1812
    %1814 = vrot.lane.b32.xlu0 %v218, 80
    %v1815 = vpop.permute.xlu0 %1814
    %1816 = vrot.lane.b32.xlu0 %v219, 80
    %v1817 = vpop.permute.xlu0 %1816
    %1818 = vrot.lane.b32.xlu0 %v220, 80
    %v1819 = vpop.permute.xlu0 %1818
    %1820 = vrot.lane.b32.xlu0 %v221, 80
    %v1821 = vpop.permute.xlu0 %1820
    %1822 = vrot.lane.b32.xlu0 %v222, 80
    %v1823 = vpop.permute.xlu0 %1822
    %1824 = vrot.lane.b32.xlu0 %v223, 80
    %v1825 = vpop.permute.xlu0 %1824
    %v1827 = vsel %vm378, %v1811, 0
    %v1830 = vsel %vm378, %v1813, 0
    %v1833 = vsel %vm378, %v1815, 0
    %v1836 = vsel %vm378, %v1817, 0
    %v1839 = vsel %vm378, %v1819, 0
    %v1842 = vsel %vm378, %v1821, 0
    %v1845 = vsel %vm378, %v1823, 0
    %v1848 = vsel %vm378, %v1825, 0
    %v1851 = vsel %vm509, %v1809, 0
    %1853 = vmatprep.subr.bf16.mxu0 0
    %1854 = vmatpush1.bf16.msra.mxu0 0
    %1855 = vmatprep.subr.bf16.mxu0 0
    %1856 = vmatpush1.bf16.msra.mxu0 0
    %1857 = vmatprep.subr.bf16.mxu0 0
    %1858 = vmatpush1.bf16.msra.mxu0 0
    %1859 = vmatprep.subr.bf16.mxu0 0
    %1860 = vmatpush1.bf16.msra.mxu0 0
    %1861 = vmatprep.subr.bf16.mxu0 0
    %1862 = vmatpush1.bf16.msra.mxu0 0
    %1863 = vmatprep.subr.bf16.mxu0 0
    %1864 = vmatpush1.bf16.msra.mxu0 0
    %1865 = vmatprep.subr.bf16.mxu0 0
    %1866 = vmatpush1.bf16.msra.mxu0 0
    %1867 = vmatprep.subr.bf16.mxu0 0
    %1868 = vmatpush1.bf16.msra.mxu0 %v1851
    %1869 = vmatprep.subr.bf16.mxu0 0
    %1870 = vmatpush2.bf16.msra.mxu0 0
    %1871 = vmatprep.subr.bf16.mxu0 0
    %1872 = vmatpush2.bf16.msra.mxu0 0
    %1873 = vmatprep.subr.bf16.mxu0 0
    %1874 = vmatpush2.bf16.msra.mxu0 0
    %1875 = vmatprep.subr.bf16.mxu0 0
    %1876 = vmatpush2.bf16.msra.mxu0 0
    %1877 = vmatprep.subr.bf16.mxu0 0
    %1878 = vmatpush2.bf16.msra.mxu0 0
    %1879 = vmatprep.subr.bf16.mxu0 0
    %1880 = vmatpush2.bf16.msra.mxu0 0
    %1881 = vmatprep.subr.bf16.mxu0 0
    %1882 = vmatpush2.bf16.msra.mxu0 0
    %1883 = vmatprep.subr.bf16.mxu0 0
    %1884 = vmatpush2.bf16.msra.mxu0 0
    %1885 = vmatprep.mubr.bf16.mxu0 0
    %1886 = vmatmul.mubr.bf16.gmra.mxu0 %v1827
    %v1887 = vpop.f32.mrf.mxu0
    %v1888 = vadd.f32 0.0, %v1887
    %v1889 = vpop.f32.mrf.mxu0
    %v1890 = vpop.f32.mrf.mxu0
    %v1891 = vadd.f32 0.0, %v1890
    %v1892 = vpop.f32.mrf.mxu0
    %1893 = vmatprep.mubr.bf16.mxu0 0
    %1894 = vmatmul.mubr.bf16.gmra.mxu0 %v1830
    %v1895 = vpop.f32.mrf.mxu0
    %v1896 = vadd.f32 0.0, %v1895
    %v1897 = vpop.f32.mrf.mxu0
    %v1898 = vpop.f32.mrf.mxu0
    %v1899 = vadd.f32 0.0, %v1898
    %v1900 = vpop.f32.mrf.mxu0
    %1901 = vmatprep.mubr.bf16.mxu0 0
    %1902 = vmatmul.mubr.bf16.gmra.mxu0 %v1833
    %v1903 = vpop.f32.mrf.mxu0
    %v1904 = vadd.f32 0.0, %v1903
    %v1905 = vpop.f32.mrf.mxu0
    %v1906 = vpop.f32.mrf.mxu0
    %v1907 = vadd.f32 0.0, %v1906
    %v1908 = vpop.f32.mrf.mxu0
    %1909 = vmatprep.mubr.bf16.mxu0 0
    %1910 = vmatmul.mubr.bf16.gmra.mxu0 %v1836
    %v1911 = vpop.f32.mrf.mxu0
    %v1912 = vadd.f32 0.0, %v1911
    %v1913 = vpop.f32.mrf.mxu0
    %v1914 = vpop.f32.mrf.mxu0
    %v1915 = vadd.f32 0.0, %v1914
    %v1916 = vpop.f32.mrf.mxu0
    %1917 = vmatprep.mubr.bf16.mxu0 0
    %1918 = vmatmul.mubr.bf16.gmra.mxu0 %v1839
    %v1919 = vpop.f32.mrf.mxu0
    %v1920 = vadd.f32 0.0, %v1919
    %v1921 = vpop.f32.mrf.mxu0
    %v1922 = vpop.f32.mrf.mxu0
    %v1923 = vadd.f32 0.0, %v1922
    %v1924 = vpop.f32.mrf.mxu0
    %1925 = vmatprep.mubr.bf16.mxu0 0
    %1926 = vmatmul.mubr.bf16.gmra.mxu0 %v1842
    %v1927 = vpop.f32.mrf.mxu0
    %v1928 = vadd.f32 0.0, %v1927
    %v1929 = vpop.f32.mrf.mxu0
    %v1930 = vpop.f32.mrf.mxu0
    %v1931 = vadd.f32 0.0, %v1930
    %v1932 = vpop.f32.mrf.mxu0
    %1933 = vmatprep.mubr.bf16.mxu0 0
    %1934 = vmatmul.mubr.bf16.gmra.mxu0 %v1845
    %v1935 = vpop.f32.mrf.mxu0
    %v1936 = vadd.f32 0.0, %v1935
    %v1937 = vpop.f32.mrf.mxu0
    %v1938 = vpop.f32.mrf.mxu0
    %v1939 = vadd.f32 0.0, %v1938
    %v1940 = vpop.f32.mrf.mxu0
    %1941 = vmatprep.mubr.bf16.mxu0 0
    %1942 = vmatmul.mubr.bf16.gmra.mxu0 %v1848
    %v1943 = vpop.f32.mrf.mxu0
    %v1944 = vadd.f32 0.0, %v1943
    %v1945 = vpop.f32.mrf.mxu0
    %v1946 = vpop.f32.mrf.mxu0
    %v1947 = vadd.f32 0.0, %v1946
    %v1948 = vpop.f32.mrf.mxu0
    %1949 = vdwg.mxu0
    %v1950 = vpack.c.bf16 %v1891, %v1888
    %v1951 = vpack.c.bf16 %v1899, %v1896
    %v1952 = vpack.c.bf16 %v1907, %v1904
    %v1953 = vpack.c.bf16 %v1915, %v1912
    %v1954 = vpack.c.bf16 %v1923, %v1920
    %v1955 = vpack.c.bf16 %v1931, %v1928
    %v1956 = vpack.c.bf16 %v1939, %v1936
    %v1957 = vpack.c.bf16 %v1947, %v1944
    %v1966 = vunpack.c.l.b16 %v1950
    %v1967 = vunpack.c.h.b16 %v1950
    %v1968 = vunpack.c.l.b16 %v1951
    %v1969 = vunpack.c.h.b16 %v1951
    %v1970 = vunpack.c.l.b16 %v1952
    %v1971 = vunpack.c.h.b16 %v1952
    %v1972 = vunpack.c.l.b16 %v1953
    %v1973 = vunpack.c.h.b16 %v1953
    %v1974 = vunpack.c.l.b16 %v1954
    %v1975 = vunpack.c.h.b16 %v1954
    %v1976 = vunpack.c.l.b16 %v1955
    %v1977 = vunpack.c.h.b16 %v1955
    %v1978 = vunpack.c.l.b16 %v1956
    %v1979 = vunpack.c.h.b16 %v1956
    %v1980 = vunpack.c.l.b16 %v1957
    %v1981 = vunpack.c.h.b16 %v1957
    %v1982 = vpack.c.b16 %v1966, %v1966
    %v1983 = vpack.c.b16 %v1967, %v1967
    %v1984 = vpack.c.b16 %v1968, %v1968
    %v1985 = vpack.c.b16 %v1969, %v1969
    %v1986 = vpack.c.b16 %v1970, %v1970
    %v1987 = vpack.c.b16 %v1971, %v1971
    %v1988 = vpack.c.b16 %v1972, %v1972
    %v1989 = vpack.c.b16 %v1973, %v1973
    %v1990 = vpack.c.b16 %v1974, %v1974
    %v1991 = vpack.c.b16 %v1975, %v1975
    %v1992 = vpack.c.b16 %v1976, %v1976
    %v1993 = vpack.c.b16 %v1977, %v1977
    %v1994 = vpack.c.b16 %v1978, %v1978
    %v1995 = vpack.c.b16 %v1979, %v1979
    %v1996 = vpack.c.b16 %v1980, %v1980
    %v1997 = vpack.c.b16 %v1981, %v1981
    %s2014 = scalar_lea.vmem %s6, 384
    %2015 = vst.msk [vmem:[%s2014] sm:$0xf] %vm674, %v1982
    %2016 = vst.msk [vmem:[%s2014 + $0x4] sm:$0xf] %vm674, %v1983
    %2017 = vst.msk [vmem:[%s2014 + $0x8] sm:$0xf] %vm674, %v1984
    %2018 = vst.msk [vmem:[%s2014 + $0xc] sm:$0xf] %vm674, %v1985
    %2019 = vst.msk [vmem:[%s2014 + $0x10] sm:$0xf] %vm674, %v1986
    %2020 = vst.msk [vmem:[%s2014 + $0x14] sm:$0xf] %vm674, %v1987
    %2021 = vst.msk [vmem:[%s2014 + $0x18] sm:$0xf] %vm674, %v1988
    %2022 = vst.msk [vmem:[%s2014 + $0x1c] sm:$0xf] %vm674, %v1989
    %2023 = vst.msk [vmem:[%s2014 + $0x20] sm:$0xf] %vm674, %v1990
    %2024 = vst.msk [vmem:[%s2014 + $0x24] sm:$0xf] %vm674, %v1991
    %2025 = vst.msk [vmem:[%s2014 + $0x28] sm:$0xf] %vm674, %v1992
    %2026 = vst.msk [vmem:[%s2014 + $0x2c] sm:$0xf] %vm674, %v1993
    %2027 = vst.msk [vmem:[%s2014 + $0x30] sm:$0xf] %vm674, %v1994
    %2028 = vst.msk [vmem:[%s2014 + $0x34] sm:$0xf] %vm674, %v1995
    %2029 = vst.msk [vmem:[%s2014 + $0x38] sm:$0xf] %vm674, %v1996
    %2030 = vst.msk [vmem:[%s2014 + $0x3c] sm:$0xf] %vm674, %v1997
    %v2031 = vld [vmem:[%s3 + $0x1c] sm:$0xf]
    %2032 = vrot.lane.b32.xlu0 %v216, 72
    %v2033 = vpop.permute.xlu0 %2032
    %2034 = vrot.lane.b32.xlu0 %v217, 72
    %v2035 = vpop.permute.xlu0 %2034
    %2036 = vrot.lane.b32.xlu0 %v218, 72
    %v2037 = vpop.permute.xlu0 %2036
    %2038 = vrot.lane.b32.xlu0 %v219, 72
    %v2039 = vpop.permute.xlu0 %2038
    %2040 = vrot.lane.b32.xlu0 %v220, 72
    %v2041 = vpop.permute.xlu0 %2040
    %2042 = vrot.lane.b32.xlu0 %v221, 72
    %v2043 = vpop.permute.xlu0 %2042
    %2044 = vrot.lane.b32.xlu0 %v222, 72
    %v2045 = vpop.permute.xlu0 %2044
    %2046 = vrot.lane.b32.xlu0 %v223, 72
    %v2047 = vpop.permute.xlu0 %2046
    %v2049 = vsel %vm378, %v2033, 0
    %v2052 = vsel %vm378, %v2035, 0
    %v2055 = vsel %vm378, %v2037, 0
    %v2058 = vsel %vm378, %v2039, 0
    %v2061 = vsel %vm378, %v2041, 0
    %v2064 = vsel %vm378, %v2043, 0
    %v2067 = vsel %vm378, %v2045, 0
    %v2070 = vsel %vm378, %v2047, 0
    %v2073 = vsel %vm509, %v2031, 0
    %2075 = vmatprep.subr.bf16.mxu0 0
    %2076 = vmatpush1.bf16.msra.mxu0 0
    %2077 = vmatprep.subr.bf16.mxu0 0
    %2078 = vmatpush1.bf16.msra.mxu0 0
    %2079 = vmatprep.subr.bf16.mxu0 0
    %2080 = vmatpush1.bf16.msra.mxu0 0
    %2081 = vmatprep.subr.bf16.mxu0 0
    %2082 = vmatpush1.bf16.msra.mxu0 0
    %2083 = vmatprep.subr.bf16.mxu0 0
    %2084 = vmatpush1.bf16.msra.mxu0 0
    %2085 = vmatprep.subr.bf16.mxu0 0
    %2086 = vmatpush1.bf16.msra.mxu0 0
    %2087 = vmatprep.subr.bf16.mxu0 0
    %2088 = vmatpush1.bf16.msra.mxu0 0
    %2089 = vmatprep.subr.bf16.mxu0 0
    %2090 = vmatpush1.bf16.msra.mxu0 %v2073
    %2091 = vmatprep.subr.bf16.mxu0 0
    %2092 = vmatpush2.bf16.msra.mxu0 0
    %2093 = vmatprep.subr.bf16.mxu0 0
    %2094 = vmatpush2.bf16.msra.mxu0 0
    %2095 = vmatprep.subr.bf16.mxu0 0
    %2096 = vmatpush2.bf16.msra.mxu0 0
    %2097 = vmatprep.subr.bf16.mxu0 0
    %2098 = vmatpush2.bf16.msra.mxu0 0
    %2099 = vmatprep.subr.bf16.mxu0 0
    %2100 = vmatpush2.bf16.msra.mxu0 0
    %2101 = vmatprep.subr.bf16.mxu0 0
    %2102 = vmatpush2.bf16.msra.mxu0 0
    %2103 = vmatprep.subr.bf16.mxu0 0
    %2104 = vmatpush2.bf16.msra.mxu0 0
    %2105 = vmatprep.subr.bf16.mxu0 0
    %2106 = vmatpush2.bf16.msra.mxu0 0
    %2107 = vmatprep.mubr.bf16.mxu0 0
    %2108 = vmatmul.mubr.bf16.gmra.mxu0 %v2049
    %v2109 = vpop.f32.mrf.mxu0
    %v2110 = vadd.f32 0.0, %v2109
    %v2111 = vpop.f32.mrf.mxu0
    %v2112 = vpop.f32.mrf.mxu0
    %v2113 = vadd.f32 0.0, %v2112
    %v2114 = vpop.f32.mrf.mxu0
    %2115 = vmatprep.mubr.bf16.mxu0 0
    %2116 = vmatmul.mubr.bf16.gmra.mxu0 %v2052
    %v2117 = vpop.f32.mrf.mxu0
    %v2118 = vadd.f32 0.0, %v2117
    %v2119 = vpop.f32.mrf.mxu0
    %v2120 = vpop.f32.mrf.mxu0
    %v2121 = vadd.f32 0.0, %v2120
    %v2122 = vpop.f32.mrf.mxu0
    %2123 = vmatprep.mubr.bf16.mxu0 0
    %2124 = vmatmul.mubr.bf16.gmra.mxu0 %v2055
    %v2125 = vpop.f32.mrf.mxu0
    %v2126 = vadd.f32 0.0, %v2125
    %v2127 = vpop.f32.mrf.mxu0
    %v2128 = vpop.f32.mrf.mxu0
    %v2129 = vadd.f32 0.0, %v2128
    %v2130 = vpop.f32.mrf.mxu0
    %2131 = vmatprep.mubr.bf16.mxu0 0
    %2132 = vmatmul.mubr.bf16.gmra.mxu0 %v2058
    %v2133 = vpop.f32.mrf.mxu0
    %v2134 = vadd.f32 0.0, %v2133
    %v2135 = vpop.f32.mrf.mxu0
    %v2136 = vpop.f32.mrf.mxu0
    %v2137 = vadd.f32 0.0, %v2136
    %v2138 = vpop.f32.mrf.mxu0
    %2139 = vmatprep.mubr.bf16.mxu0 0
    %2140 = vmatmul.mubr.bf16.gmra.mxu0 %v2061
    %v2141 = vpop.f32.mrf.mxu0
    %v2142 = vadd.f32 0.0, %v2141
    %v2143 = vpop.f32.mrf.mxu0
    %v2144 = vpop.f32.mrf.mxu0
    %v2145 = vadd.f32 0.0, %v2144
    %v2146 = vpop.f32.mrf.mxu0
    %2147 = vmatprep.mubr.bf16.mxu0 0
    %2148 = vmatmul.mubr.bf16.gmra.mxu0 %v2064
    %v2149 = vpop.f32.mrf.mxu0
    %v2150 = vadd.f32 0.0, %v2149
    %v2151 = vpop.f32.mrf.mxu0
    %v2152 = vpop.f32.mrf.mxu0
    %v2153 = vadd.f32 0.0, %v2152
    %v2154 = vpop.f32.mrf.mxu0
    %2155 = vmatprep.mubr.bf16.mxu0 0
    %2156 = vmatmul.mubr.bf16.gmra.mxu0 %v2067
    %v2157 = vpop.f32.mrf.mxu0
    %v2158 = vadd.f32 0.0, %v2157
    %v2159 = vpop.f32.mrf.mxu0
    %v2160 = vpop.f32.mrf.mxu0
    %v2161 = vadd.f32 0.0, %v2160
    %v2162 = vpop.f32.mrf.mxu0
    %2163 = vmatprep.mubr.bf16.mxu0 0
    %2164 = vmatmul.mubr.bf16.gmra.mxu0 %v2070
    %v2165 = vpop.f32.mrf.mxu0
    %v2166 = vadd.f32 0.0, %v2165
    %v2167 = vpop.f32.mrf.mxu0
    %v2168 = vpop.f32.mrf.mxu0
    %v2169 = vadd.f32 0.0, %v2168
    %v2170 = vpop.f32.mrf.mxu0
    %2171 = vdwg.mxu0
    %v2172 = vpack.c.bf16 %v2113, %v2110
    %v2173 = vpack.c.bf16 %v2121, %v2118
    %v2174 = vpack.c.bf16 %v2129, %v2126
    %v2175 = vpack.c.bf16 %v2137, %v2134
    %v2176 = vpack.c.bf16 %v2145, %v2142
    %v2177 = vpack.c.bf16 %v2153, %v2150
    %v2178 = vpack.c.bf16 %v2161, %v2158
    %v2179 = vpack.c.bf16 %v2169, %v2166
    %v2188 = vunpack.c.l.b16 %v2172
    %v2189 = vunpack.c.h.b16 %v2172
    %v2190 = vunpack.c.l.b16 %v2173
    %v2191 = vunpack.c.h.b16 %v2173
    %v2192 = vunpack.c.l.b16 %v2174
    %v2193 = vunpack.c.h.b16 %v2174
    %v2194 = vunpack.c.l.b16 %v2175
    %v2195 = vunpack.c.h.b16 %v2175
    %v2196 = vunpack.c.l.b16 %v2176
    %v2197 = vunpack.c.h.b16 %v2176
    %v2198 = vunpack.c.l.b16 %v2177
    %v2199 = vunpack.c.h.b16 %v2177
    %v2200 = vunpack.c.l.b16 %v2178
    %v2201 = vunpack.c.h.b16 %v2178
    %v2202 = vunpack.c.l.b16 %v2179
    %v2203 = vunpack.c.h.b16 %v2179
    %v2204 = vpack.c.b16 %v2188, %v2188
    %v2205 = vpack.c.b16 %v2189, %v2189
    %v2206 = vpack.c.b16 %v2190, %v2190
    %v2207 = vpack.c.b16 %v2191, %v2191
    %v2208 = vpack.c.b16 %v2192, %v2192
    %v2209 = vpack.c.b16 %v2193, %v2193
    %v2210 = vpack.c.b16 %v2194, %v2194
    %v2211 = vpack.c.b16 %v2195, %v2195
    %v2212 = vpack.c.b16 %v2196, %v2196
    %v2213 = vpack.c.b16 %v2197, %v2197
    %v2214 = vpack.c.b16 %v2198, %v2198
    %v2215 = vpack.c.b16 %v2199, %v2199
    %v2216 = vpack.c.b16 %v2200, %v2200
    %v2217 = vpack.c.b16 %v2201, %v2201
    %v2218 = vpack.c.b16 %v2202, %v2202
    %v2219 = vpack.c.b16 %v2203, %v2203
    %s2236 = scalar_lea.vmem %s6, 448
    %2237 = vst.msk [vmem:[%s2236] sm:$0xf] %vm674, %v2204
    %2238 = vst.msk [vmem:[%s2236 + $0x4] sm:$0xf] %vm674, %v2205
    %2239 = vst.msk [vmem:[%s2236 + $0x8] sm:$0xf] %vm674, %v2206
    %2240 = vst.msk [vmem:[%s2236 + $0xc] sm:$0xf] %vm674, %v2207
    %2241 = vst.msk [vmem:[%s2236 + $0x10] sm:$0xf] %vm674, %v2208
    %2242 = vst.msk [vmem:[%s2236 + $0x14] sm:$0xf] %vm674, %v2209
    %2243 = vst.msk [vmem:[%s2236 + $0x18] sm:$0xf] %vm674, %v2210
    %2244 = vst.msk [vmem:[%s2236 + $0x1c] sm:$0xf] %vm674, %v2211
    %2245 = vst.msk [vmem:[%s2236 + $0x20] sm:$0xf] %vm674, %v2212
    %2246 = vst.msk [vmem:[%s2236 + $0x24] sm:$0xf] %vm674, %v2213
    %2247 = vst.msk [vmem:[%s2236 + $0x28] sm:$0xf] %vm674, %v2214
    %2248 = vst.msk [vmem:[%s2236 + $0x2c] sm:$0xf] %vm674, %v2215
    %2249 = vst.msk [vmem:[%s2236 + $0x30] sm:$0xf] %vm674, %v2216
    %2250 = vst.msk [vmem:[%s2236 + $0x34] sm:$0xf] %vm674, %v2217
    %2251 = vst.msk [vmem:[%s2236 + $0x38] sm:$0xf] %vm674, %v2218
    %2252 = vst.msk [vmem:[%s2236 + $0x3c] sm:$0xf] %vm674, %v2219
    // Predicated region
    $region18: #{tpu_custom_call.1} parent=1 // pred_check
      _
    $region19: #{tpu_custom_call.1} parent=1 // pred_check_branch
      %2254 = sbr.rel (0) target = $region21
    $region20: #{tpu_custom_call.1} parent=1 // pred_region
      _
    $region21: #{tpu_custom_call.1} parent=1 // pred_fallthru
      _
    // Predicated region
    $region22: #{tpu_custom_call.1} parent=1 // pred_check
      _
    $region23: #{tpu_custom_call.1} parent=1 // pred_check_branch
      %2256 = sbr.rel (0) target = $region25
    $region24: #{tpu_custom_call.1} parent=1 // pred_region
      %s2258 = ssub.s32 128, 128
      %2259 = vsyncadd [#allocation3], %s2258
      %s2261 = sshll.u32 [#allocation2], 4
      %s2262 = int_to_ptr.vmem [resolvable:$true] %s2261
      %2264 = dma.vmem_to_hbm [thread:$0]  %s2262, 128, %s5, [#allocation3]
    $region25: #{tpu_custom_call.1} parent=1 // pred_fallthru
      _
    // Predicated region
    $region26: #{tpu_custom_call.1} parent=1 // pred_check
      _
    $region27: #{tpu_custom_call.1} parent=1 // pred_check_branch
      %2266 = sbr.rel (0) target = $region29
    $region28: #{tpu_custom_call.1} parent=1 // pred_region
      _
    $region29: #{tpu_custom_call.1} parent=1 // pred_fallthru
      _
    // Predicated region
    $region30: #{tpu_custom_call.1} parent=1 // pred_check
      _
    $region31: #{tpu_custom_call.1} parent=1 // pred_check_branch
      %2268 = sbr.rel (0) target = $region33
    $region32: #{tpu_custom_call.1} parent=1 // pred_region
      _
    $region33: #{tpu_custom_call.1} parent=1 // pred_fallthru
      _
    // Predicated region
    $region34: #{tpu_custom_call.1} parent=1 // pred_check
      _
    $region35: #{tpu_custom_call.1} parent=1 // pred_check_branch
      %2270 = sbr.rel (0) target = $region37
    $region36: #{tpu_custom_call.1} parent=1 // pred_region
      %2271 = dma.done [#allocation3], 128
    $region37: #{tpu_custom_call.1} parent=1 // pred_fallthru
      _
    // Predicated region
    $region38: #{tpu_custom_call.1} parent=1 // pred_check
      _
    $region39: #{tpu_custom_call.1} parent=1 // pred_check_branch
      %2273 = sbr.rel (0) target = $region41
    $region40: #{tpu_custom_call.1} parent=1 // pred_region
      _
    $region41: #{tpu_custom_call.1} parent=1 // pred_fallthru
      _
    %2274 = vsyncpa [#allocation3], 1

</llo_original>
